<compile_context>
chip_gen: v7x
topology: tpu7x:2x2x1
jax: 0.10.0
libtpu: 0.0.40
codegen_flags: <defaults>
</compile_context>

<pallas_src>
import jax
import jax.numpy as jnp
from jax.experimental import pallas as pl
from jax.experimental.pallas import tpu as pltpu


def _round_up(x, m):
    return ((x + m - 1) // m) * m


def _make_conv_stats_kernel(tile_k, weight_resident):
    """grid = (pixel tiles, K tiles); K is the (last, sequential) reduction axis.

    acc_ref is an f32 VMEM scratch accumulator resident across the K axis.
    At the last K step each pixel tile writes:
      * its bf16 conv output block, and
      * its own per-channel partial sum / sum-of-squares row (no cross-tile
        accumulation -> the pixel axis can be megacore-"parallel").
    Zero-padded pixel rows produce exactly-zero conv outputs (no bias added),
    so they contribute nothing to the statistics and need no masking.
    """

    def kernel(x_ref, w_ref, y_ref, sum_ref, sq_ref, acc_ref):
        k = pl.program_id(1)
        nk = pl.num_programs(1)

        @pl.when(k == 0)
        def _():
            acc_ref[...] = jnp.zeros_like(acc_ref)

        if weight_resident:
            # Full weight stays resident in VMEM (constant index_map -> DMAed
            # once, not once per pixel tile); slice out the current K block.
            start = pl.multiple_of(k * tile_k, tile_k)
            w = w_ref[pl.ds(start, tile_k), :]
        else:
            w = w_ref[...]

        # bf16 x bf16 -> f32 on the MXU.
        acc_ref[...] += jnp.dot(x_ref[...], w,
                                preferred_element_type=jnp.float32)

        @pl.when(k == nk - 1)
        def _():
            y = acc_ref[...]
            # TODO(synk): for 1x1 convs this axis-0 reduce could run on the MXU
            #             as ones(1, tile_p) @ y / ones @ (y*y) to free VPU/XLU.
            sum_ref[...] = jnp.sum(y, axis=0, keepdims=True)[None]
            sq_ref[...] = jnp.sum(y * y, axis=0, keepdims=True)[None]
            y_ref[...] = y.astype(y_ref.dtype)

    return kernel


def _bn_relu_kernel(y_ref, scale_ref, shift_ref, o_ref):
    """Fused affine BatchNorm + ReLU: out = max(y * scale + shift, 0).

    y is bf16 (halved HBM traffic); the affine is applied in f32.
    """
    y = y_ref[...].astype(jnp.float32)
    o_ref[...] = jnp.maximum(y * scale_ref[...] + shift_ref[...], 0.0)


def sconv_bn_relu2d(x, weight, bias, gamma, beta, *,
                    stride=1, padding=0, dilation=1, groups=1,
                    eps=1e-5, max_tile_p=1024, max_tile_k=512):
    """x: (N, C_in, H, W) float32.  weight: (C_out, C_in, kh, kw).  Returns NCHW f32."""
    assert groups == 1  # TODO(synk): grouped conv not implemented in this kernel.
    N, C_in, H, W = x.shape
    C_out, _, kh, kw = weight.shape

    # `bias` is intentionally NOT added before the BatchNorm: a per-channel
    # constant is exactly cancelled by the training-mode mean subtraction, so
    # the forward output is identical while saving a VPU add, one resident VMEM
    # buffer and one input DMA per tile.  (Only BN running-stat buffers, which
    # are not computed here, would differ.)
    del bias

    # --- glue: im2col patch extraction in bf16 (pure data movement, by XLA) ----
    # TODO(synk): for kh*kw > 1 this still materializes a (P, K) array; a fused
    # patch-gathering kernel over an NHWC input would avoid the inflation.
    patches = jax.lax.conv_general_dilated_patches(
        x.astype(jnp.bfloat16),
        filter_shape=(kh, kw),
        window_strides=(stride, stride),
        padding=[(padding, padding), (padding, padding)],
        rhs_dilation=(dilation, dilation),
        dimension_numbers=("NCHW", "OIHW", "NCHW"),
    )                                                  # (N, K, H_out, W_out) bf16
    _, K, H_out, W_out = patches.shape
    P = N * H_out * W_out
    patches = patches.transpose(0, 2, 3, 1).reshape(P, K)          # (P, K) bf16

    # --- lane-dense padding / tile selection ------------------------------------
    C_out_pad = _round_up(C_out, 128)
    # tile_k rounded to 256: fills the 2x256^2 MXU on v6e/v7x (harmless on v5e).
    if K <= max_tile_k:
        tile_k = _round_up(K, 256)
        K_pad = tile_k
    else:
        tile_k = _round_up(max_tile_k, 256)
        K_pad = _round_up(K, tile_k)
    n_k_tiles = K_pad // tile_k

    # Keep the weight matrix resident in VMEM whenever it fits (budget counted
    # double-buffered to be conservative); otherwise fall back to K-blocked DMA.
    w_bytes = K_pad * C_out_pad * 2
    weight_resident = (2 * w_bytes) <= (8 << 20)

    # Pixel tile: largest candidate whose kernel-1 working set fits a budget
    # that is safe on every generation (v7x has the tightest VMEM).
    # TODO(synk): for very large C_out on v7x, add a C_out grid axis instead of
    #             shrinking tile_p.
    vmem_budget = 24 << 20

    def _k1_bytes(tp):
        b = 2 * tp * tile_k * 2                                  # patches, bf16, x2 bufs
        b += (2 * w_bytes) if weight_resident else (2 * tile_k * C_out_pad * 2)
        b += 2 * tp * C_out_pad * 2                              # y out, bf16, x2 bufs
        b += tp * C_out_pad * 4                                  # f32 accumulator scratch
        b += 4 * 2 * 2 * C_out_pad * 4                           # stats outputs (tiny)
        return b

    tile_p = max(256, _round_up(max_tile_p, 256))
    while tile_p > 256 and _k1_bytes(tile_p) > vmem_budget:
        tile_p //= 2
    tile_p = min(tile_p, _round_up(P, 16))                       # don't over-pad small P
    P_pad = _round_up(P, tile_p)
    n_p_tiles = P_pad // tile_p

    patches_bf = jnp.pad(patches, ((0, P_pad - P), (0, K_pad - K)))      # (P_pad, K_pad)
    w2d = jnp.pad(weight.reshape(C_out, K).T.astype(jnp.bfloat16),
                  ((0, K_pad - K), (0, C_out_pad - C_out)))              # (K_pad, C_out_pad)

    w_spec = (pl.BlockSpec((K_pad, C_out_pad), lambda i, k: (0, 0))      # VMEM-resident
              if weight_resident else
              pl.BlockSpec((tile_k, C_out_pad), lambda i, k: (k, 0)))    # K-blocked

    vmem1 = int(min(max(32 << 20, (_k1_bytes(tile_p) * 3) // 2), 48 << 20))

    # --- kernel 1: conv matmul (K-blocked) + per-tile partial batch stats ------
    y_pad, psum, psq = pl.pallas_call(
        _make_conv_stats_kernel(tile_k, weight_resident),
        out_shape=(
            jax.ShapeDtypeStruct((P_pad, C_out_pad), jnp.bfloat16),
            jax.ShapeDtypeStruct((n_p_tiles, 1, C_out_pad), jnp.float32),
            jax.ShapeDtypeStruct((n_p_tiles, 1, C_out_pad), jnp.float32),
        ),
        grid_spec=pltpu.PrefetchScalarGridSpec(
            num_scalar_prefetch=0,
            grid=(n_p_tiles, n_k_tiles),               # reduction (K) axis last
            in_specs=[
                pl.BlockSpec((tile_p, tile_k), lambda i, k: (i, k)),
                w_spec,
            ],
            out_specs=[
                pl.BlockSpec((tile_p, C_out_pad), lambda i, k: (i, 0)),
                pl.BlockSpec((1, 1, C_out_pad), lambda i, k: (i, 0, 0)),
                pl.BlockSpec((1, 1, C_out_pad), lambda i, k: (i, 0, 0)),
            ],
            scratch_shapes=[pltpu.VMEM((tile_p, C_out_pad), jnp.float32)],
        ),
        # Per-pixel-tile partial stats -> pixel axis is truly independent, so it
        # can be megacore-sharded on v7x.
        compiler_params=pltpu.CompilerParams(
            dimension_semantics=("parallel", "arbitrary"),
            vmem_limit_bytes=vmem1),
    )(patches_bf, w2d)

    # --- glue: reduce partials, fold stats + gamma/beta into scale/shift -------
    csum = jnp.sum(psum.reshape(n_p_tiles, C_out_pad), axis=0, keepdims=True)
    csq = jnp.sum(psq.reshape(n_p_tiles, C_out_pad), axis=0, keepdims=True)
    mean = csum / P
    # TODO(synk): E[y^2] - mean^2 in f32 can cancel when |mean| >> std; a shifted
    #             / two-pass variance would be more robust for extreme activations.
    var = jnp.maximum(csq / P - mean * mean, 0.0)
    inv_std = jax.lax.rsqrt(var + eps)
    gamma_p = jnp.pad(gamma.astype(jnp.float32).reshape(1, C_out),
                      ((0, 0), (0, C_out_pad - C_out)))
    beta_p = jnp.pad(beta.astype(jnp.float32).reshape(1, C_out),
                     ((0, 0), (0, C_out_pad - C_out)))
    scale = gamma_p * inv_std                        # (1, C_out_pad)
    shift = beta_p - mean * scale                    # (1, C_out_pad)

    # --- kernel 2: fused BN affine + ReLU (pure HBM streaming, own bigger tile) -
    bytes_per_row = C_out_pad * (2 * 2 + 2 * 4)      # bf16 in + f32 out, double-buffered
    tile_p2 = tile_p
    while (P_pad % (tile_p2 * 2) == 0
           and (tile_p2 * 2) * bytes_per_row <= (24 << 20)):
        tile_p2 *= 2
    n_p2_tiles = P_pad // tile_p2
    vmem2 = int(min(max(32 << 20, (tile_p2 * bytes_per_row * 3) // 2), 48 << 20))

    out_pad = pl.pallas_call(
        _bn_relu_kernel,
        out_shape=jax.ShapeDtypeStruct((P_pad, C_out_pad), jnp.float32),
        grid_spec=pltpu.PrefetchScalarGridSpec(
            num_scalar_prefetch=0,
            grid=(n_p2_tiles,),
            in_specs=[
                pl.BlockSpec((tile_p2, C_out_pad), lambda i: (i, 0)),
                pl.BlockSpec((1, C_out_pad), lambda i: (0, 0)),
                pl.BlockSpec((1, C_out_pad), lambda i: (0, 0)),
            ],
            out_specs=pl.BlockSpec((tile_p2, C_out_pad), lambda i: (i, 0)),
        ),
        compiler_params=pltpu.CompilerParams(
            dimension_semantics=("parallel",),
            vmem_limit_bytes=vmem2),
    )(y_pad, scale, shift)

    # --- back to the module's NCHW f32 interface --------------------------------
    # TODO(synk): if the consumer accepts NHWC (or bf16), skip this transpose —
    #             it is a full extra HBM read+write of the output.
    out = out_pad[:P, :C_out].reshape(N, H_out, W_out, C_out).transpose(0, 3, 1, 2)
    return out


def _reference(x, weight, gamma, beta, *, stride, padding, dilation, eps=1e-5):
    """Pure-JAX reference: conv (bf16 operands, f32 accum) + training-mode
    BatchNorm2d + ReLU, NCHW.  (Bias omitted: no-op before training-mode BN.)"""
    y = jax.lax.conv_general_dilated(
        x.astype(jnp.bfloat16), weight.astype(jnp.bfloat16),
        window_strides=(stride, stride),
        padding=[(padding, padding), (padding, padding)],
        rhs_dilation=(dilation, dilation),
        dimension_numbers=("NCHW", "OIHW", "NCHW"),
        preferred_element_type=jnp.float32)
    mean = jnp.mean(y, axis=(0, 2, 3), keepdims=True)
    var = jnp.mean((y - mean) ** 2, axis=(0, 2, 3), keepdims=True)
    y = (y - mean) * jax.lax.rsqrt(var + eps)
    y = y * gamma.reshape(1, -1, 1, 1) + beta.reshape(1, -1, 1, 1)
    return jnp.maximum(y, 0.0)


if __name__ == "__main__":
    # Small shapes consistent with the module: SConv_BN_Relu2d(4, 8) with module
    # defaults kernel_size=1, stride=1, padding=0, dilation=1, groups=1.
    N, C_in, C_out, H, W = 2, 4, 8, 16, 16
    kh = kw = 1
    stride, padding, dilation = 1, 0, 1

    key = jax.random.PRNGKey(0)
    kx, kw_, kb, kg, kbe = jax.random.split(key, 5)
    x = jax.random.normal(kx, (N, C_in, H, W), dtype=jnp.float32)
    weight = 0.1 * jax.random.normal(kw_, (C_out, C_in, kh, kw), dtype=jnp.float32)
    bias = 0.1 * jax.random.normal(kb, (C_out,), dtype=jnp.float32)
    gamma = 1.0 + 0.1 * jax.random.normal(kg, (C_out,), dtype=jnp.float32)
    beta = 0.1 * jax.random.normal(kbe, (C_out,), dtype=jnp.float32)

    out = sconv_bn_relu2d(x, weight, bias, gamma, beta,
                          stride=stride, padding=padding, dilation=dilation)
    out = jax.block_until_ready(out)

    ref = _reference(x, weight, gamma, beta,
                     stride=stride, padding=padding, dilation=dilation)
    assert out.shape == (N, C_out, H, W)
    # Tolerance covers the bf16 materialization of the conv output between the
    # two kernels (<= ~1e-2 after the BN normalization); structural errors are O(1).
    assert jnp.allclose(out, ref, atol=2e-2, rtol=2e-2), "mismatch vs reference"

    print("KERNEL_OK")
</pallas_src>

<mosaic_0001>
module attributes {stable_mosaic.version = 11 : i64} {
  func.func @kernel(%arg0: i32, %arg1: i32, %arg2: memref<512x256xbf16, #tpu.memory_space<vmem>>, %arg3: memref<256x128xbf16, #tpu.memory_space<vmem>>, %arg4: memref<512x128xbf16, #tpu.memory_space<vmem>>, %arg5: memref<1x1x128xf32, #tpu.memory_space<vmem>>, %arg6: memref<1x1x128xf32, #tpu.memory_space<vmem>>, %arg7: memref<512x128xf32, #tpu.memory_space<vmem>>) attributes {dimension_semantics = [#tpu.dimension_semantics<parallel>, #tpu.dimension_semantics<arbitrary>], iteration_bounds = array<i64: 1, 1>, scalar_prefetch = 0 : i64, scratch_operands = 1 : i64, tpu.core_type = #tpu.core_type<tc>, window_params = [{transform_indices = @transform_0, window_bounds = array<i64: 512, 256>}, {pipeline_mode = #tpu.pipeline_mode<synchronous>, transform_indices = @transform_1, window_bounds = array<i64: 256, 128>}, {transform_indices = @transform_2, window_bounds = array<i64: 512, 128>}, {transform_indices = @transform_3, window_bounds = array<i64: 1, 1, 128>}, {transform_indices = @transform_4, window_bounds = array<i64: 1, 1, 128>}]} {
    %c0_i32 = arith.constant 0 : i32
    %0 = arith.cmpi eq, %arg1, %c0_i32 : i32
    %1 = arith.extui %0 : i1 to i32
    %c0_i32_0 = arith.constant 0 : i32
    %2 = arith.cmpi ne, %1, %c0_i32_0 : i32
    scf.if %2 {
      %cst_9 = arith.constant 0.000000e+00 : f32
      %15 = vector.broadcast %cst_9 : f32 to vector<512x128xf32>
      %c0_10 = arith.constant 0 : index
      %c0_11 = arith.constant 0 : index
      %16 = vector.load %arg7[%c0_10, %c0_11] : memref<512x128xf32, #tpu.memory_space<vmem>>, vector<512x128xf32>
      tpu.vector_store %arg7[%c0_10, %c0_11], %15 {strides = array<i32>} : memref<512x128xf32, #tpu.memory_space<vmem>>, vector<512x128xf32>,
    } else {
    }
    %c256_i32 = arith.constant 256 : i32
    %3 = arith.muli %arg1, %c256_i32 : i32
    %4 = tpu.assume_multiple %3, 256 : i32
    %5 = arith.index_cast %4 : i32 to index
    %c0 = arith.constant 0 : index
    %6 = vector.load %arg3[%5, %c0] : memref<256x128xbf16, #tpu.memory_space<vmem>>, vector<256x128xbf16>
    %c0_1 = arith.constant 0 : index
    %c0_2 = arith.constant 0 : index
    %7 = vector.load %arg7[%c0_1, %c0_2] : memref<512x128xf32, #tpu.memory_space<vmem>>, vector<512x128xf32>
    %c0_3 = arith.constant 0 : index
    %c0_4 = arith.constant 0 : index
    %8 = vector.load %arg2[%c0_3, %c0_4] : memref<512x256xbf16, #tpu.memory_space<vmem>>, vector<512x256xbf16>
    %cst = arith.constant dense<0.000000e+00> : vector<512x128xf32>
    %9 = tpu.matmul %8, %6, %cst {dimension_numbers = #tpu.dot_dimension_numbers<[1], [0], [0], [1], [0, 0, 1, 1], [], []>} : vector<512x256xbf16>, vector<256x128xbf16>, vector<512x128xf32> -> vector<512x128xf32>
    %10 = arith.addf %7, %9 : vector<512x128xf32>
    %c0_5 = arith.constant 0 : index
    %c0_6 = arith.constant 0 : index
    %11 = vector.load %arg7[%c0_5, %c0_6] : memref<512x128xf32, #tpu.memory_space<vmem>>, vector<512x128xf32>
    tpu.vector_store %arg7[%c0_5, %c0_6], %10 {strides = array<i32>} : memref<512x128xf32, #tpu.memory_space<vmem>>, vector<512x128xf32>,
    %c0_i32_7 = arith.constant 0 : i32
    %12 = arith.cmpi eq, %arg1, %c0_i32_7 : i32
    %13 = arith.extui %12 : i1 to i32
    %c0_i32_8 = arith.constant 0 : i32
    %14 = arith.cmpi ne, %13, %c0_i32_8 : i32
    scf.if %14 {
      %c0_9 = arith.constant 0 : index
      %c0_10 = arith.constant 0 : index
      %15 = vector.load %arg7[%c0_9, %c0_10] : memref<512x128xf32, #tpu.memory_space<vmem>>, vector<512x128xf32>
      %cst_11 = arith.constant dense<0.000000e+00> : vector<128xf32>
      %16 = vector.multi_reduction <add>, %15, %cst_11 [0] : vector<512x128xf32> to vector<128xf32>
      %17 = vector.shape_cast %16 : vector<128xf32> to vector<1x128xf32>
      %18 = vector.shape_cast %17 : vector<1x128xf32> to vector<1x1x128xf32>
      %c0_12 = arith.constant 0 : index
      %c0_13 = arith.constant 0 : index
      %c0_14 = arith.constant 0 : index
      %19 = vector.load %arg5[%c0_12, %c0_13, %c0_14] : memref<1x1x128xf32, #tpu.memory_space<vmem>>, vector<1x1x128xf32>
      tpu.vector_store %arg5[%c0_12, %c0_13, %c0_14], %18 {strides = array<i32>} : memref<1x1x128xf32, #tpu.memory_space<vmem>>, vector<1x1x128xf32>,
      %20 = arith.mulf %15, %15 : vector<512x128xf32>
      %cst_15 = arith.constant dense<0.000000e+00> : vector<128xf32>
      %21 = vector.multi_reduction <add>, %20, %cst_15 [0] : vector<512x128xf32> to vector<128xf32>
      %22 = vector.shape_cast %21 : vector<128xf32> to vector<1x128xf32>
      %23 = vector.shape_cast %22 : vector<1x128xf32> to vector<1x1x128xf32>
      %c0_16 = arith.constant 0 : index
      %c0_17 = arith.constant 0 : index
      %c0_18 = arith.constant 0 : index
      %24 = vector.load %arg6[%c0_16, %c0_17, %c0_18] : memref<1x1x128xf32, #tpu.memory_space<vmem>>, vector<1x1x128xf32>
      tpu.vector_store %arg6[%c0_16, %c0_17, %c0_18], %23 {strides = array<i32>} : memref<1x1x128xf32, #tpu.memory_space<vmem>>, vector<1x1x128xf32>,
      %25 = arith.truncf %15 : vector<512x128xf32> to vector<512x128xbf16>
      %c0_19 = arith.constant 0 : index
      %c0_20 = arith.constant 0 : index
      %26 = vector.load %arg4[%c0_19, %c0_20] : memref<512x128xbf16, #tpu.memory_space<vmem>>, vector<512x128xbf16>
      tpu.vector_store %arg4[%c0_19, %c0_20], %25 {strides = array<i32>} : memref<512x128xbf16, #tpu.memory_space<vmem>>, vector<512x128xbf16>,
    } else {
    }
    return
  }
  func.func @transform_0(%arg0: i32, %arg1: i32) -> (i32, i32) {
    %c0_i32 = arith.constant 0 : i32
    return %arg0, %arg1 : i32, i32
  }
  func.func @transform_1(%arg0: i32, %arg1: i32) -> (i32, i32) {
    %c0_i32 = arith.constant 0 : i32
    %c0_i32_0 = arith.constant 0 : i32
    %c0_i32_1 = arith.constant 0 : i32
    return %c0_i32, %c0_i32_0 : i32, i32
  }
  func.func @transform_2(%arg0: i32, %arg1: i32) -> (i32, i32) {
    %c0_i32 = arith.constant 0 : i32
    %c0_i32_0 = arith.constant 0 : i32
    return %arg0, %c0_i32 : i32, i32
  }
  func.func @transform_3(%arg0: i32, %arg1: i32) -> (i32, i32, i32) {
    %c0_i32 = arith.constant 0 : i32
    %c0_i32_0 = arith.constant 0 : i32
    %c0_i32_1 = arith.constant 0 : i32
    return %arg0, %c0_i32, %c0_i32_0 : i32, i32, i32
  }
  func.func @transform_4(%arg0: i32, %arg1: i32) -> (i32, i32, i32) {
    %c0_i32 = arith.constant 0 : i32
    %c0_i32_0 = arith.constant 0 : i32
    %c0_i32_1 = arith.constant 0 : i32
    return %arg0, %c0_i32, %c0_i32_0 : i32, i32, i32
  }
}

</mosaic_0001>

<llo_original>
// kernel: tpu_custom_call.1
$region0: #{tpu_custom_call.1}
  #allocation0 [shape = 'u32[]', space=smem, size = 0x4, offset = 0x4, fixed_abs, tag = 'smem constant byte address 0x4 - core index']
  #allocation1 [shape = 'u32[144,128]{1,0:T(1,128)}', space=vmem, size = 0x12000, scoped, tag = 'internal scratch']
  #allocation2 [shape = 'f32[512,128]{1,0:T(8,128)}', space=vmem, size = 0x40000, scoped, tag = 'scratch operand']
  %s0 = inlined_call_operand.hbm [shape: bf16[512,256], index: 0, kind: input, shape index: {}]
  %s1 = inlined_call_operand.hbm [shape: bf16[256,128], index: 1, kind: input, shape index: {}]
  %s2 = inlined_call_operand.hbm [shape: bf16[512,128], index: 2, kind: output, shape index: {0}]
  %s3 = inlined_call_operand.hbm [shape: f32[1,1,128], index: 3, kind: output, shape index: {1}]
  %s4 = inlined_call_operand.hbm [shape: f32[1,1,128], index: 4, kind: output, shape index: {2}]
  %5 = xla_tuple %s2, %s3, %s4
  %s6 = sld [smem:[#allocation0]]
  $region50: #{tpu_custom_call.1} parent=0
    _
  %s8 = ssub.s32 1, %s6
  %s9 = scalar_select 0, %s8, %s6
  $region1: #{tpu_custom_call.1} parent=0
    #allocation3 [shape = 'u8[262144]{0}', space=vmem, size = 0x40000, scoped, tag = 'input window, operand 0, single buffered']
    #allocation4 [shape = 's32[1]{0}', space=sflag, size = 0x4, scoped, tag = 'scoped memory for tpu_custom_call.1']
    #allocation5 [shape = 's32[1]{0}', space=sflag, size = 0x4, scoped, tag = 'scoped memory for tpu_custom_call.1']
    #allocation6 [shape = 'u8[65536]{0}', space=vmem, size = 0x10000, scoped, tag = 'input window, operand 1, single buffered']
    #allocation7 [shape = 's32[1]{0}', space=sflag, size = 0x4, scoped, tag = 'scoped memory for tpu_custom_call.1']
    #allocation8 [shape = 'u8[131072]{0}', space=vmem, size = 0x20000, scoped, tag = 'output window, operand 0, single buffered']
    #allocation9 [shape = 'u8[512]{0}', space=vmem, size = 0x400, scoped, tag = 'output window, operand 1, single buffered']
    #allocation10 [shape = 's32[1]{0}', space=sflag, size = 0x4, scoped, tag = 'scoped memory for tpu_custom_call.1']
    #allocation11 [shape = 'u8[512]{0}', space=vmem, size = 0x400, scoped, tag = 'output window, operand 2, single buffered']
    %10 = vsyncpa [#allocation4], 0
    %11 = vsyncpa [#allocation7], 0
    %12 = vsyncpa [#allocation5], 0
    %13 = vsyncpa [#allocation10], 0
    // Predicated region
    $region2: #{tpu_custom_call.1} parent=1 // pred_check
      _
    $region3: #{tpu_custom_call.1} parent=1 // pred_check_branch
      %15 = sbr.rel (0) target = $region5
    $region4: #{tpu_custom_call.1} parent=1 // pred_region
      %s17 = ssub.s32 8192, 8192
      %18 = vsyncadd [#allocation4], %s17
      %s19 = sshll.u32 [#allocation3], 4
      %s20 = int_to_ptr.vmem [resolvable:$true] %s19
      %25 = dma.hbm_to_vmem [thread:$0]  %s0, 8192, %s20, [#allocation4], 128, 128, 8
    $region5: #{tpu_custom_call.1} parent=1 // pred_fallthru
      _
    // Predicated region
    $region6: #{tpu_custom_call.1} parent=1 // pred_check
      _
    $region7: #{tpu_custom_call.1} parent=1 // pred_check_branch
      %27 = sbr.rel (0) target = $region9
    $region8: #{tpu_custom_call.1} parent=1 // pred_region
      %s29 = ssub.s32 2048, 2048
      %30 = vsyncadd [#allocation7], %s29
      %s31 = sshll.u32 [#allocation6], 4
      %s32 = int_to_ptr.vmem [resolvable:$true] %s31
      %37 = dma.hbm_to_vmem [thread:$0]  %s1, 2048, %s32, [#allocation7], 64, 64, 4
    $region9: #{tpu_custom_call.1} parent=1 // pred_fallthru
      _
    // Predicated region
    $region10: #{tpu_custom_call.1} parent=1 // pred_check
      _
    $region11: #{tpu_custom_call.1} parent=1 // pred_check_branch
      %39 = sbr.rel (0) target = $region13
    $region12: #{tpu_custom_call.1} parent=1 // pred_region
      %40 = dma.done [#allocation4], 8192
    $region13: #{tpu_custom_call.1} parent=1 // pred_fallthru
      _
    // Predicated region
    $region14: #{tpu_custom_call.1} parent=1 // pred_check
      _
    $region15: #{tpu_custom_call.1} parent=1 // pred_check_branch
      %42 = sbr.rel (0) target = $region17
    $region16: #{tpu_custom_call.1} parent=1 // pred_region
      %43 = dma.done [#allocation7], 2048
    $region17: #{tpu_custom_call.1} parent=1 // pred_fallthru
      _
    %p45 = scmp.eq.s32.totalorder 0, 0
    // Predicated region
    $region18: #{tpu_custom_call.1} parent=1 // pred_check
      %p46 = pneg %p45
    $region19: #{tpu_custom_call.1} parent=1 // pred_check_branch
      %48 = sbr.rel (%p46) target = $region21
    $region20: #{tpu_custom_call.1} parent=1 // pred_region
      %49 = vst [vmem:[#allocation2] sm:$0xff] 0.0
      %50 = vst [vmem:[#allocation2 + $0x8] sm:$0xff] 0.0
      %51 = vst [vmem:[#allocation2 + $0x10] sm:$0xff] 0.0
      %52 = vst [vmem:[#allocation2 + $0x18] sm:$0xff] 0.0
      %53 = vst [vmem:[#allocation2 + $0x20] sm:$0xff] 0.0
      %54 = vst [vmem:[#allocation2 + $0x28] sm:$0xff] 0.0
      %55 = vst [vmem:[#allocation2 + $0x30] sm:$0xff] 0.0
      %56 = vst [vmem:[#allocation2 + $0x38] sm:$0xff] 0.0
      %57 = vst [vmem:[#allocation2 + $0x40] sm:$0xff] 0.0
      %58 = vst [vmem:[#allocation2 + $0x48] sm:$0xff] 0.0
      %59 = vst [vmem:[#allocation2 + $0x50] sm:$0xff] 0.0
      %60 = vst [vmem:[#allocation2 + $0x58] sm:$0xff] 0.0
      %61 = vst [vmem:[#allocation2 + $0x60] sm:$0xff] 0.0
      %62 = vst [vmem:[#allocation2 + $0x68] sm:$0xff] 0.0
      %63 = vst [vmem:[#allocation2 + $0x70] sm:$0xff] 0.0
      %64 = vst [vmem:[#allocation2 + $0x78] sm:$0xff] 0.0
      %65 = vst [vmem:[#allocation2 + $0x80] sm:$0xff] 0.0
      %66 = vst [vmem:[#allocation2 + $0x88] sm:$0xff] 0.0
      %67 = vst [vmem:[#allocation2 + $0x90] sm:$0xff] 0.0
      %68 = vst [vmem:[#allocation2 + $0x98] sm:$0xff] 0.0
      %69 = vst [vmem:[#allocation2 + $0xa0] sm:$0xff] 0.0
      %70 = vst [vmem:[#allocation2 + $0xa8] sm:$0xff] 0.0
      %71 = vst [vmem:[#allocation2 + $0xb0] sm:$0xff] 0.0
      %72 = vst [vmem:[#allocation2 + $0xb8] sm:$0xff] 0.0
      %73 = vst [vmem:[#allocation2 + $0xc0] sm:$0xff] 0.0
      %74 = vst [vmem:[#allocation2 + $0xc8] sm:$0xff] 0.0
      %75 = vst [vmem:[#allocation2 + $0xd0] sm:$0xff] 0.0
      %76 = vst [vmem:[#allocation2 + $0xd8] sm:$0xff] 0.0
      %77 = vst [vmem:[#allocation2 + $0xe0] sm:$0xff] 0.0
      %78 = vst [vmem:[#allocation2 + $0xe8] sm:$0xff] 0.0
      %79 = vst [vmem:[#allocation2 + $0xf0] sm:$0xff] 0.0
      %80 = vst [vmem:[#allocation2 + $0xf8] sm:$0xff] 0.0
      %81 = vst [vmem:[#allocation2 + $0x100] sm:$0xff] 0.0
      %82 = vst [vmem:[#allocation2 + $0x108] sm:$0xff] 0.0
      %83 = vst [vmem:[#allocation2 + $0x110] sm:$0xff] 0.0
      %84 = vst [vmem:[#allocation2 + $0x118] sm:$0xff] 0.0
      %85 = vst [vmem:[#allocation2 + $0x120] sm:$0xff] 0.0
      %86 = vst [vmem:[#allocation2 + $0x128] sm:$0xff] 0.0
      %87 = vst [vmem:[#allocation2 + $0x130] sm:$0xff] 0.0
      %88 = vst [vmem:[#allocation2 + $0x138] sm:$0xff] 0.0
      %89 = vst [vmem:[#allocation2 + $0x140] sm:$0xff] 0.0
      %90 = vst [vmem:[#allocation2 + $0x148] sm:$0xff] 0.0
      %91 = vst [vmem:[#allocation2 + $0x150] sm:$0xff] 0.0
      %92 = vst [vmem:[#allocation2 + $0x158] sm:$0xff] 0.0
      %93 = vst [vmem:[#allocation2 + $0x160] sm:$0xff] 0.0
      %94 = vst [vmem:[#allocation2 + $0x168] sm:$0xff] 0.0
      %95 = vst [vmem:[#allocation2 + $0x170] sm:$0xff] 0.0
      %96 = vst [vmem:[#allocation2 + $0x178] sm:$0xff] 0.0
      %97 = vst [vmem:[#allocation2 + $0x180] sm:$0xff] 0.0
      %98 = vst [vmem:[#allocation2 + $0x188] sm:$0xff] 0.0
      %99 = vst [vmem:[#allocation2 + $0x190] sm:$0xff] 0.0
      %100 = vst [vmem:[#allocation2 + $0x198] sm:$0xff] 0.0
      %101 = vst [vmem:[#allocation2 + $0x1a0] sm:$0xff] 0.0
      %102 = vst [vmem:[#allocation2 + $0x1a8] sm:$0xff] 0.0
      %103 = vst [vmem:[#allocation2 + $0x1b0] sm:$0xff] 0.0
      %104 = vst [vmem:[#allocation2 + $0x1b8] sm:$0xff] 0.0
      %105 = vst [vmem:[#allocation2 + $0x1c0] sm:$0xff] 0.0
      %106 = vst [vmem:[#allocation2 + $0x1c8] sm:$0xff] 0.0
      %107 = vst [vmem:[#allocation2 + $0x1d0] sm:$0xff] 0.0
      %108 = vst [vmem:[#allocation2 + $0x1d8] sm:$0xff] 0.0
      %109 = vst [vmem:[#allocation2 + $0x1e0] sm:$0xff] 0.0
      %110 = vst [vmem:[#allocation2 + $0x1e8] sm:$0xff] 0.0
      %111 = vst [vmem:[#allocation2 + $0x1f0] sm:$0xff] 0.0
      %112 = vst [vmem:[#allocation2 + $0x1f8] sm:$0xff] 0.0
    $region21: #{tpu_custom_call.1} parent=1 // pred_fallthru
      _
    %s113 = smul.u32 0, 256
    %s114 = sshra.s32 %s113, 3
    %s115 = sand.u32 %s113, 7
    %s116 = smul.addr %s114, 4
    %s117 = scalar_lea.vmem [#allocation6], %s116
    %v118 = vld [vmem:[%s117] sm:$0xf]
    %v119 = vld [vmem:[%s117 + $0x4] sm:$0xf]
    %v120 = vld [vmem:[%s117 + $0x8] sm:$0xf]
    %v121 = vld [vmem:[%s117 + $0xc] sm:$0xf]
    %v122 = vld [vmem:[%s117 + $0x10] sm:$0xf]
    %v123 = vld [vmem:[%s117 + $0x14] sm:$0xf]
    %v124 = vld [vmem:[%s117 + $0x18] sm:$0xf]
    %v125 = vld [vmem:[%s117 + $0x1c] sm:$0xf]
    %v126 = vld [vmem:[%s117 + $0x20] sm:$0xf]
    %v127 = vld [vmem:[%s117 + $0x24] sm:$0xf]
    %v128 = vld [vmem:[%s117 + $0x28] sm:$0xf]
    %v129 = vld [vmem:[%s117 + $0x2c] sm:$0xf]
    %v130 = vld [vmem:[%s117 + $0x30] sm:$0xf]
    %v131 = vld [vmem:[%s117 + $0x34] sm:$0xf]
    %v132 = vld [vmem:[%s117 + $0x38] sm:$0xf]
    %v133 = vld [vmem:[%s117 + $0x3c] sm:$0xf]
    %v134 = vld [vmem:[%s117 + $0x40] sm:$0xf]
    %v135 = vld [vmem:[%s117 + $0x44] sm:$0xf]
    %v136 = vld [vmem:[%s117 + $0x48] sm:$0xf]
    %v137 = vld [vmem:[%s117 + $0x4c] sm:$0xf]
    %v138 = vld [vmem:[%s117 + $0x50] sm:$0xf]
    %v139 = vld [vmem:[%s117 + $0x54] sm:$0xf]
    %v140 = vld [vmem:[%s117 + $0x58] sm:$0xf]
    %v141 = vld [vmem:[%s117 + $0x5c] sm:$0xf]
    %v142 = vld [vmem:[%s117 + $0x60] sm:$0xf]
    %v143 = vld [vmem:[%s117 + $0x64] sm:$0xf]
    %v144 = vld [vmem:[%s117 + $0x68] sm:$0xf]
    %v145 = vld [vmem:[%s117 + $0x6c] sm:$0xf]
    %v146 = vld [vmem:[%s117 + $0x70] sm:$0xf]
    %v147 = vld [vmem:[%s117 + $0x74] sm:$0xf]
    %v148 = vld [vmem:[%s117 + $0x78] sm:$0xf]
    %v149 = vld [vmem:[%s117 + $0x7c] sm:$0xf]
    %v150 = vld [vmem:[#allocation2] sm:$0xff]
    %v151 = vld [vmem:[#allocation2 + $0x8] sm:$0xff]
    %v152 = vld [vmem:[#allocation2 + $0x10] sm:$0xff]
    %v153 = vld [vmem:[#allocation2 + $0x18] sm:$0xff]
    %v154 = vld [vmem:[#allocation2 + $0x20] sm:$0xff]
    %v155 = vld [vmem:[#allocation2 + $0x28] sm:$0xff]
    %v156 = vld [vmem:[#allocation2 + $0x30] sm:$0xff]
    %v157 = vld [vmem:[#allocation2 + $0x38] sm:$0xff]
    %v158 = vld [vmem:[#allocation2 + $0x40] sm:$0xff]
    %v159 = vld [vmem:[#allocation2 + $0x48] sm:$0xff]
    %v160 = vld [vmem:[#allocation2 + $0x50] sm:$0xff]
    %v161 = vld [vmem:[#allocation2 + $0x58] sm:$0xff]
    %v162 = vld [vmem:[#allocation2 + $0x60] sm:$0xff]
    %v163 = vld [vmem:[#allocation2 + $0x68] sm:$0xff]
    %v164 = vld [vmem:[#allocation2 + $0x70] sm:$0xff]
    %v165 = vld [vmem:[#allocation2 + $0x78] sm:$0xff]
    %v166 = vld [vmem:[#allocation2 + $0x80] sm:$0xff]
    %v167 = vld [vmem:[#allocation2 + $0x88] sm:$0xff]
    %v168 = vld [vmem:[#allocation2 + $0x90] sm:$0xff]
    %v169 = vld [vmem:[#allocation2 + $0x98] sm:$0xff]
    %v170 = vld [vmem:[#allocation2 + $0xa0] sm:$0xff]
    %v171 = vld [vmem:[#allocation2 + $0xa8] sm:$0xff]
    %v172 = vld [vmem:[#allocation2 + $0xb0] sm:$0xff]
    %v173 = vld [vmem:[#allocation2 + $0xb8] sm:$0xff]
    %v174 = vld [vmem:[#allocation2 + $0xc0] sm:$0xff]
    %v175 = vld [vmem:[#allocation2 + $0xc8] sm:$0xff]
    %v176 = vld [vmem:[#allocation2 + $0xd0] sm:$0xff]
    %v177 = vld [vmem:[#allocation2 + $0xd8] sm:$0xff]
    %v178 = vld [vmem:[#allocation2 + $0xe0] sm:$0xff]
    %v179 = vld [vmem:[#allocation2 + $0xe8] sm:$0xff]
    %v180 = vld [vmem:[#allocation2 + $0xf0] sm:$0xff]
    %v181 = vld [vmem:[#allocation2 + $0xf8] sm:$0xff]
    %v182 = vld [vmem:[#allocation2 + $0x100] sm:$0xff]
    %v183 = vld [vmem:[#allocation2 + $0x108] sm:$0xff]
    %v184 = vld [vmem:[#allocation2 + $0x110] sm:$0xff]
    %v185 = vld [vmem:[#allocation2 + $0x118] sm:$0xff]
    %v186 = vld [vmem:[#allocation2 + $0x120] sm:$0xff]
    %v187 = vld [vmem:[#allocation2 + $0x128] sm:$0xff]
    %v188 = vld [vmem:[#allocation2 + $0x130] sm:$0xff]
    %v189 = vld [vmem:[#allocation2 + $0x138] sm:$0xff]
    %v190 = vld [vmem:[#allocation2 + $0x140] sm:$0xff]
    %v191 = vld [vmem:[#allocation2 + $0x148] sm:$0xff]
    %v192 = vld [vmem:[#allocation2 + $0x150] sm:$0xff]
    %v193 = vld [vmem:[#allocation2 + $0x158] sm:$0xff]
    %v194 = vld [vmem:[#allocation2 + $0x160] sm:$0xff]
    %v195 = vld [vmem:[#allocation2 + $0x168] sm:$0xff]
    %v196 = vld [vmem:[#allocation2 + $0x170] sm:$0xff]
    %v197 = vld [vmem:[#allocation2 + $0x178] sm:$0xff]
    %v198 = vld [vmem:[#allocation2 + $0x180] sm:$0xff]
    %v199 = vld [vmem:[#allocation2 + $0x188] sm:$0xff]
    %v200 = vld [vmem:[#allocation2 + $0x190] sm:$0xff]
    %v201 = vld [vmem:[#allocation2 + $0x198] sm:$0xff]
    %v202 = vld [vmem:[#allocation2 + $0x1a0] sm:$0xff]
    %v203 = vld [vmem:[#allocation2 + $0x1a8] sm:$0xff]
    %v204 = vld [vmem:[#allocation2 + $0x1b0] sm:$0xff]
    %v205 = vld [vmem:[#allocation2 + $0x1b8] sm:$0xff]
    %v206 = vld [vmem:[#allocation2 + $0x1c0] sm:$0xff]
    %v207 = vld [vmem:[#allocation2 + $0x1c8] sm:$0xff]
    %v208 = vld [vmem:[#allocation2 + $0x1d0] sm:$0xff]
    %v209 = vld [vmem:[#allocation2 + $0x1d8] sm:$0xff]
    %v210 = vld [vmem:[#allocation2 + $0x1e0] sm:$0xff]
    %v211 = vld [vmem:[#allocation2 + $0x1e8] sm:$0xff]
    %v212 = vld [vmem:[#allocation2 + $0x1f0] sm:$0xff]
    %v213 = vld [vmem:[#allocation2 + $0x1f8] sm:$0xff]
    %v214 = vld [vmem:[#allocation3] sm:$0xff]
    %v215 = vld [vmem:[#allocation3 + $0x8] sm:$0xff]
    %v216 = vld [vmem:[#allocation3 + $0x10] sm:$0xff]
    %v217 = vld [vmem:[#allocation3 + $0x18] sm:$0xff]
    %v218 = vld [vmem:[#allocation3 + $0x20] sm:$0xff]
    %v219 = vld [vmem:[#allocation3 + $0x28] sm:$0xff]
    %v220 = vld [vmem:[#allocation3 + $0x30] sm:$0xff]
    %v221 = vld [vmem:[#allocation3 + $0x38] sm:$0xff]
    %v222 = vld [vmem:[#allocation3 + $0x40] sm:$0xff]
    %v223 = vld [vmem:[#allocation3 + $0x48] sm:$0xff]
    %v224 = vld [vmem:[#allocation3 + $0x50] sm:$0xff]
    %v225 = vld [vmem:[#allocation3 + $0x58] sm:$0xff]
    %v226 = vld [vmem:[#allocation3 + $0x60] sm:$0xff]
    %v227 = vld [vmem:[#allocation3 + $0x68] sm:$0xff]
    %v228 = vld [vmem:[#allocation3 + $0x70] sm:$0xff]
    %v229 = vld [vmem:[#allocation3 + $0x78] sm:$0xff]
    %v230 = vld [vmem:[#allocation3 + $0x80] sm:$0xff]
    %v231 = vld [vmem:[#allocation3 + $0x88] sm:$0xff]
    %v232 = vld [vmem:[#allocation3 + $0x90] sm:$0xff]
    %v233 = vld [vmem:[#allocation3 + $0x98] sm:$0xff]
    %v234 = vld [vmem:[#allocation3 + $0xa0] sm:$0xff]
    %v235 = vld [vmem:[#allocation3 + $0xa8] sm:$0xff]
    %v236 = vld [vmem:[#allocation3 + $0xb0] sm:$0xff]
    %v237 = vld [vmem:[#allocation3 + $0xb8] sm:$0xff]
    %v238 = vld [vmem:[#allocation3 + $0xc0] sm:$0xff]
    %v239 = vld [vmem:[#allocation3 + $0xc8] sm:$0xff]
    %v240 = vld [vmem:[#allocation3 + $0xd0] sm:$0xff]
    %v241 = vld [vmem:[#allocation3 + $0xd8] sm:$0xff]
    %v242 = vld [vmem:[#allocation3 + $0xe0] sm:$0xff]
    %v243 = vld [vmem:[#allocation3 + $0xe8] sm:$0xff]
    %v244 = vld [vmem:[#allocation3 + $0xf0] sm:$0xff]
    %v245 = vld [vmem:[#allocation3 + $0xf8] sm:$0xff]
    %v246 = vld [vmem:[#allocation3 + $0x100] sm:$0xff]
    %v247 = vld [vmem:[#allocation3 + $0x108] sm:$0xff]
    %v248 = vld [vmem:[#allocation3 + $0x110] sm:$0xff]
    %v249 = vld [vmem:[#allocation3 + $0x118] sm:$0xff]
    %v250 = vld [vmem:[#allocation3 + $0x120] sm:$0xff]
    %v251 = vld [vmem:[#allocation3 + $0x128] sm:$0xff]
    %v252 = vld [vmem:[#allocation3 + $0x130] sm:$0xff]
    %v253 = vld [vmem:[#allocation3 + $0x138] sm:$0xff]
    %v254 = vld [vmem:[#allocation3 + $0x140] sm:$0xff]
    %v255 = vld [vmem:[#allocation3 + $0x148] sm:$0xff]
    %v256 = vld [vmem:[#allocation3 + $0x150] sm:$0xff]
    %v257 = vld [vmem:[#allocation3 + $0x158] sm:$0xff]
    %v258 = vld [vmem:[#allocation3 + $0x160] sm:$0xff]
    %v259 = vld [vmem:[#allocation3 + $0x168] sm:$0xff]
    %v260 = vld [vmem:[#allocation3 + $0x170] sm:$0xff]
    %v261 = vld [vmem:[#allocation3 + $0x178] sm:$0xff]
    %v262 = vld [vmem:[#allocation3 + $0x180] sm:$0xff]
    %v263 = vld [vmem:[#allocation3 + $0x188] sm:$0xff]
    %v264 = vld [vmem:[#allocation3 + $0x190] sm:$0xff]
    %v265 = vld [vmem:[#allocation3 + $0x198] sm:$0xff]
    %v266 = vld [vmem:[#allocation3 + $0x1a0] sm:$0xff]
    %v267 = vld [vmem:[#allocation3 + $0x1a8] sm:$0xff]
    %v268 = vld [vmem:[#allocation3 + $0x1b0] sm:$0xff]
    %v269 = vld [vmem:[#allocation3 + $0x1b8] sm:$0xff]
    %v270 = vld [vmem:[#allocation3 + $0x1c0] sm:$0xff]
    %v271 = vld [vmem:[#allocation3 + $0x1c8] sm:$0xff]
    %v272 = vld [vmem:[#allocation3 + $0x1d0] sm:$0xff]
    %v273 = vld [vmem:[#allocation3 + $0x1d8] sm:$0xff]
    %v274 = vld [vmem:[#allocation3 + $0x1e0] sm:$0xff]
    %v275 = vld [vmem:[#allocation3 + $0x1e8] sm:$0xff]
    %v276 = vld [vmem:[#allocation3 + $0x1f0] sm:$0xff]
    %v277 = vld [vmem:[#allocation3 + $0x1f8] sm:$0xff]
    %v342 = vunpack.c.l.b16 %v214
    %v343 = vunpack.c.h.b16 %v214
    %v344 = vunpack.c.l.b16 %v215
    %v345 = vunpack.c.h.b16 %v215
    %v346 = vunpack.c.l.b16 %v216
    %v347 = vunpack.c.h.b16 %v216
    %v348 = vunpack.c.l.b16 %v217
    %v349 = vunpack.c.h.b16 %v217
    %v350 = vunpack.c.l.b16 %v218
    %v351 = vunpack.c.h.b16 %v218
    %v352 = vunpack.c.l.b16 %v219
    %v353 = vunpack.c.h.b16 %v219
    %v354 = vunpack.c.l.b16 %v220
    %v355 = vunpack.c.h.b16 %v220
    %v356 = vunpack.c.l.b16 %v221
    %v357 = vunpack.c.h.b16 %v221
    %v358 = vunpack.c.l.b16 %v222
    %v359 = vunpack.c.h.b16 %v222
    %v360 = vunpack.c.l.b16 %v223
    %v361 = vunpack.c.h.b16 %v223
    %v362 = vunpack.c.l.b16 %v224
    %v363 = vunpack.c.h.b16 %v224
    %v364 = vunpack.c.l.b16 %v225
    %v365 = vunpack.c.h.b16 %v225
    %v366 = vunpack.c.l.b16 %v226
    %v367 = vunpack.c.h.b16 %v226
    %v368 = vunpack.c.l.b16 %v227
    %v369 = vunpack.c.h.b16 %v227
    %v370 = vunpack.c.l.b16 %v228
    %v371 = vunpack.c.h.b16 %v228
    %v372 = vunpack.c.l.b16 %v229
    %v373 = vunpack.c.h.b16 %v229
    %v374 = vunpack.c.l.b16 %v230
    %v375 = vunpack.c.h.b16 %v230
    %v376 = vunpack.c.l.b16 %v231
    %v377 = vunpack.c.h.b16 %v231
    %v378 = vunpack.c.l.b16 %v232
    %v379 = vunpack.c.h.b16 %v232
    %v380 = vunpack.c.l.b16 %v233
    %v381 = vunpack.c.h.b16 %v233
    %v382 = vunpack.c.l.b16 %v234
    %v383 = vunpack.c.h.b16 %v234
    %v384 = vunpack.c.l.b16 %v235
    %v385 = vunpack.c.h.b16 %v235
    %v386 = vunpack.c.l.b16 %v236
    %v387 = vunpack.c.h.b16 %v236
    %v388 = vunpack.c.l.b16 %v237
    %v389 = vunpack.c.h.b16 %v237
    %v390 = vunpack.c.l.b16 %v238
    %v391 = vunpack.c.h.b16 %v238
    %v392 = vunpack.c.l.b16 %v239
    %v393 = vunpack.c.h.b16 %v239
    %v394 = vunpack.c.l.b16 %v240
    %v395 = vunpack.c.h.b16 %v240
    %v396 = vunpack.c.l.b16 %v241
    %v397 = vunpack.c.h.b16 %v241
    %v398 = vunpack.c.l.b16 %v242
    %v399 = vunpack.c.h.b16 %v242
    %v400 = vunpack.c.l.b16 %v243
    %v401 = vunpack.c.h.b16 %v243
    %v402 = vunpack.c.l.b16 %v244
    %v403 = vunpack.c.h.b16 %v244
    %v404 = vunpack.c.l.b16 %v245
    %v405 = vunpack.c.h.b16 %v245
    %v406 = vunpack.c.l.b16 %v246
    %v407 = vunpack.c.h.b16 %v246
    %v408 = vunpack.c.l.b16 %v247
    %v409 = vunpack.c.h.b16 %v247
    %v410 = vunpack.c.l.b16 %v248
    %v411 = vunpack.c.h.b16 %v248
    %v412 = vunpack.c.l.b16 %v249
    %v413 = vunpack.c.h.b16 %v249
    %v414 = vunpack.c.l.b16 %v250
    %v415 = vunpack.c.h.b16 %v250
    %v416 = vunpack.c.l.b16 %v251
    %v417 = vunpack.c.h.b16 %v251
    %v418 = vunpack.c.l.b16 %v252
    %v419 = vunpack.c.h.b16 %v252
    %v420 = vunpack.c.l.b16 %v253
    %v421 = vunpack.c.h.b16 %v253
    %v422 = vunpack.c.l.b16 %v254
    %v423 = vunpack.c.h.b16 %v254
    %v424 = vunpack.c.l.b16 %v255
    %v425 = vunpack.c.h.b16 %v255
    %v426 = vunpack.c.l.b16 %v256
    %v427 = vunpack.c.h.b16 %v256
    %v428 = vunpack.c.l.b16 %v257
    %v429 = vunpack.c.h.b16 %v257
    %v430 = vunpack.c.l.b16 %v258
    %v431 = vunpack.c.h.b16 %v258
    %v432 = vunpack.c.l.b16 %v259
    %v433 = vunpack.c.h.b16 %v259
    %v434 = vunpack.c.l.b16 %v260
    %v435 = vunpack.c.h.b16 %v260
    %v436 = vunpack.c.l.b16 %v261
    %v437 = vunpack.c.h.b16 %v261
    %v438 = vunpack.c.l.b16 %v262
    %v439 = vunpack.c.h.b16 %v262
    %v440 = vunpack.c.l.b16 %v263
    %v441 = vunpack.c.h.b16 %v263
    %v442 = vunpack.c.l.b16 %v264
    %v443 = vunpack.c.h.b16 %v264
    %v444 = vunpack.c.l.b16 %v265
    %v445 = vunpack.c.h.b16 %v265
    %v446 = vunpack.c.l.b16 %v266
    %v447 = vunpack.c.h.b16 %v266
    %v448 = vunpack.c.l.b16 %v267
    %v449 = vunpack.c.h.b16 %v267
    %v450 = vunpack.c.l.b16 %v268
    %v451 = vunpack.c.h.b16 %v268
    %v452 = vunpack.c.l.b16 %v269
    %v453 = vunpack.c.h.b16 %v269
    %v454 = vunpack.c.l.b16 %v270
    %v455 = vunpack.c.h.b16 %v270
    %v456 = vunpack.c.l.b16 %v271
    %v457 = vunpack.c.h.b16 %v271
    %v458 = vunpack.c.l.b16 %v272
    %v459 = vunpack.c.h.b16 %v272
    %v460 = vunpack.c.l.b16 %v273
    %v461 = vunpack.c.h.b16 %v273
    %v462 = vunpack.c.l.b16 %v274
    %v463 = vunpack.c.h.b16 %v274
    %v464 = vunpack.c.l.b16 %v275
    %v465 = vunpack.c.h.b16 %v275
    %v466 = vunpack.c.l.b16 %v276
    %v467 = vunpack.c.h.b16 %v276
    %v468 = vunpack.c.l.b16 %v277
    %v469 = vunpack.c.h.b16 %v277
    %v470 = vpack.c.b16 %v344, %v342
    %v471 = vpack.c.b16 %v345, %v343
    %v472 = vpack.c.b16 %v348, %v346
    %v473 = vpack.c.b16 %v349, %v347
    %v474 = vpack.c.b16 %v352, %v350
    %v475 = vpack.c.b16 %v353, %v351
    %v476 = vpack.c.b16 %v356, %v354
    %v477 = vpack.c.b16 %v357, %v355
    %v478 = vpack.c.b16 %v360, %v358
    %v479 = vpack.c.b16 %v361, %v359
    %v480 = vpack.c.b16 %v364, %v362
    %v481 = vpack.c.b16 %v365, %v363
    %v482 = vpack.c.b16 %v368, %v366
    %v483 = vpack.c.b16 %v369, %v367
    %v484 = vpack.c.b16 %v372, %v370
    %v485 = vpack.c.b16 %v373, %v371
    %v486 = vpack.c.b16 %v376, %v374
    %v487 = vpack.c.b16 %v377, %v375
    %v488 = vpack.c.b16 %v380, %v378
    %v489 = vpack.c.b16 %v381, %v379
    %v490 = vpack.c.b16 %v384, %v382
    %v491 = vpack.c.b16 %v385, %v383
    %v492 = vpack.c.b16 %v388, %v386
    %v493 = vpack.c.b16 %v389, %v387
    %v494 = vpack.c.b16 %v392, %v390
    %v495 = vpack.c.b16 %v393, %v391
    %v496 = vpack.c.b16 %v396, %v394
    %v497 = vpack.c.b16 %v397, %v395
    %v498 = vpack.c.b16 %v400, %v398
    %v499 = vpack.c.b16 %v401, %v399
    %v500 = vpack.c.b16 %v404, %v402
    %v501 = vpack.c.b16 %v405, %v403
    %v502 = vpack.c.b16 %v408, %v406
    %v503 = vpack.c.b16 %v409, %v407
    %v504 = vpack.c.b16 %v412, %v410
    %v505 = vpack.c.b16 %v413, %v411
    %v506 = vpack.c.b16 %v416, %v414
    %v507 = vpack.c.b16 %v417, %v415
    %v508 = vpack.c.b16 %v420, %v418
    %v509 = vpack.c.b16 %v421, %v419
    %v510 = vpack.c.b16 %v424, %v422
    %v511 = vpack.c.b16 %v425, %v423
    %v512 = vpack.c.b16 %v428, %v426
    %v513 = vpack.c.b16 %v429, %v427
    %v514 = vpack.c.b16 %v432, %v430
    %v515 = vpack.c.b16 %v433, %v431
    %v516 = vpack.c.b16 %v436, %v434
    %v517 = vpack.c.b16 %v437, %v435
    %v518 = vpack.c.b16 %v440, %v438
    %v519 = vpack.c.b16 %v441, %v439
    %v520 = vpack.c.b16 %v444, %v442
    %v521 = vpack.c.b16 %v445, %v443
    %v522 = vpack.c.b16 %v448, %v446
    %v523 = vpack.c.b16 %v449, %v447
    %v524 = vpack.c.b16 %v452, %v450
    %v525 = vpack.c.b16 %v453, %v451
    %v526 = vpack.c.b16 %v456, %v454
    %v527 = vpack.c.b16 %v457, %v455
    %v528 = vpack.c.b16 %v460, %v458
    %v529 = vpack.c.b16 %v461, %v459
    %v530 = vpack.c.b16 %v464, %v462
    %v531 = vpack.c.b16 %v465, %v463
    %v532 = vpack.c.b16 %v468, %v466
    %v533 = vpack.c.b16 %v469, %v467
    %v630 = vunpack.c.l.b16 %v118
    %v631 = vunpack.c.l.b16 %v119
    %v632 = vunpack.c.l.b16 %v120
    %v633 = vunpack.c.l.b16 %v121
    %v634 = vunpack.c.l.b16 %v122
    %v635 = vunpack.c.l.b16 %v123
    %v636 = vunpack.c.l.b16 %v124
    %v637 = vunpack.c.l.b16 %v125
    %v638 = vunpack.c.l.b16 %v126
    %v639 = vunpack.c.l.b16 %v127
    %v640 = vunpack.c.l.b16 %v128
    %v641 = vunpack.c.l.b16 %v129
    %v642 = vunpack.c.l.b16 %v130
    %v643 = vunpack.c.l.b16 %v131
    %v644 = vunpack.c.l.b16 %v132
    %v645 = vunpack.c.l.b16 %v133
    %v646 = vunpack.c.l.b16 %v134
    %v647 = vunpack.c.l.b16 %v135
    %v648 = vunpack.c.l.b16 %v136
    %v649 = vunpack.c.l.b16 %v137
    %v650 = vunpack.c.l.b16 %v138
    %v651 = vunpack.c.l.b16 %v139
    %v652 = vunpack.c.l.b16 %v140
    %v653 = vunpack.c.l.b16 %v141
    %v654 = vunpack.c.l.b16 %v142
    %v655 = vunpack.c.l.b16 %v143
    %v656 = vunpack.c.l.b16 %v144
    %v657 = vunpack.c.l.b16 %v145
    %v658 = vunpack.c.l.b16 %v146
    %v659 = vunpack.c.l.b16 %v147
    %v660 = vunpack.c.l.b16 %v148
    %v661 = vunpack.c.l.b16 %v149
    %v662 = vpack.c.b16 %v631, %v630
    %v663 = vpack.c.b16 %v633, %v632
    %v664 = vpack.c.b16 %v635, %v634
    %v665 = vpack.c.b16 %v637, %v636
    %v666 = vpack.c.b16 %v639, %v638
    %v667 = vpack.c.b16 %v641, %v640
    %v668 = vpack.c.b16 %v643, %v642
    %v669 = vpack.c.b16 %v645, %v644
    %v670 = vpack.c.b16 %v647, %v646
    %v671 = vpack.c.b16 %v649, %v648
    %v672 = vpack.c.b16 %v651, %v650
    %v673 = vpack.c.b16 %v653, %v652
    %v674 = vpack.c.b16 %v655, %v654
    %v675 = vpack.c.b16 %v657, %v656
    %v676 = vpack.c.b16 %v659, %v658
    %v677 = vpack.c.b16 %v661, %v660
    %694 = vmatprep.subr.bf16.mxu0 0
    %695 = vmatpush1.bf16.msra.mxu0 %v662
    %696 = vmatprep.subr.bf16.mxu0 0
    %697 = vmatpush1.bf16.msra.mxu0 %v663
    %698 = vmatprep.subr.bf16.mxu0 0
    %699 = vmatpush1.bf16.msra.mxu0 %v664
    %700 = vmatprep.subr.bf16.mxu0 0
    %701 = vmatpush1.bf16.msra.mxu0 %v665
    %702 = vmatprep.subr.bf16.mxu0 0
    %703 = vmatpush1.bf16.msra.mxu0 %v666
    %704 = vmatprep.subr.bf16.mxu0 0
    %705 = vmatpush1.bf16.msra.mxu0 %v667
    %706 = vmatprep.subr.bf16.mxu0 0
    %707 = vmatpush1.bf16.msra.mxu0 %v668
    %708 = vmatprep.subr.bf16.mxu0 0
    %709 = vmatpush1.bf16.msra.mxu0 %v669
    %710 = vmatprep.subr.bf16.mxu0 0
    %711 = vmatpush1.bf16.msra.mxu0 %v670
    %712 = vmatprep.subr.bf16.mxu0 0
    %713 = vmatpush1.bf16.msra.mxu0 %v671
    %714 = vmatprep.subr.bf16.mxu0 0
    %715 = vmatpush1.bf16.msra.mxu0 %v672
    %716 = vmatprep.subr.bf16.mxu0 0
    %717 = vmatpush1.bf16.msra.mxu0 %v673
    %718 = vmatprep.subr.bf16.mxu0 0
    %719 = vmatpush1.bf16.msra.mxu0 %v674
    %720 = vmatprep.subr.bf16.mxu0 0
    %721 = vmatpush1.bf16.msra.mxu0 %v675
    %722 = vmatprep.subr.bf16.mxu0 0
    %723 = vmatpush1.bf16.msra.mxu0 %v676
    %724 = vmatprep.subr.bf16.mxu0 0
    %725 = vmatpush1.bf16.msra.mxu0 %v677
    %726 = vmatprep.mubr.bf16.mxu0 %v471
    %727 = vmatmul.mubr.bf16.gmra.mrb[0].mxu0 %v470
    %v728 = vpop.f32.mrb[0].mxu0
    %v729 = vadd.f32 0.0, %v728
    %v730 = vpop.f32.mrb[0].mxu0
    %v731 = vpop.f32.mrb[0].mxu0
    %v732 = vadd.f32 0.0, %v731
    %v733 = vpop.f32.mrb[0].mxu0
    %734 = vmatprep.mubr.bf16.mxu0 %v473
    %735 = vmatmul.mubr.bf16.gmra.mrb[0].mxu0 %v472
    %v736 = vpop.f32.mrb[0].mxu0
    %v737 = vadd.f32 0.0, %v736
    %v738 = vpop.f32.mrb[0].mxu0
    %v739 = vpop.f32.mrb[0].mxu0
    %v740 = vadd.f32 0.0, %v739
    %v741 = vpop.f32.mrb[0].mxu0
    %742 = vmatprep.mubr.bf16.mxu0 %v475
    %743 = vmatmul.mubr.bf16.gmra.mrb[0].mxu0 %v474
    %v744 = vpop.f32.mrb[0].mxu0
    %v745 = vadd.f32 0.0, %v744
    %v746 = vpop.f32.mrb[0].mxu0
    %v747 = vpop.f32.mrb[0].mxu0
    %v748 = vadd.f32 0.0, %v747
    %v749 = vpop.f32.mrb[0].mxu0
    %750 = vmatprep.mubr.bf16.mxu0 %v477
    %751 = vmatmul.mubr.bf16.gmra.mrb[0].mxu0 %v476
    %v752 = vpop.f32.mrb[0].mxu0
    %v753 = vadd.f32 0.0, %v752
    %v754 = vpop.f32.mrb[0].mxu0
    %v755 = vpop.f32.mrb[0].mxu0
    %v756 = vadd.f32 0.0, %v755
    %v757 = vpop.f32.mrb[0].mxu0
    %758 = vmatprep.mubr.bf16.mxu0 %v479
    %759 = vmatmul.mubr.bf16.gmra.mrb[0].mxu0 %v478
    %v760 = vpop.f32.mrb[0].mxu0
    %v761 = vadd.f32 0.0, %v760
    %v762 = vpop.f32.mrb[0].mxu0
    %v763 = vpop.f32.mrb[0].mxu0
    %v764 = vadd.f32 0.0, %v763
    %v765 = vpop.f32.mrb[0].mxu0
    %766 = vmatprep.mubr.bf16.mxu0 %v481
    %767 = vmatmul.mubr.bf16.gmra.mrb[0].mxu0 %v480
    %v768 = vpop.f32.mrb[0].mxu0
    %v769 = vadd.f32 0.0, %v768
    %v770 = vpop.f32.mrb[0].mxu0
    %v771 = vpop.f32.mrb[0].mxu0
    %v772 = vadd.f32 0.0, %v771
    %v773 = vpop.f32.mrb[0].mxu0
    %774 = vmatprep.mubr.bf16.mxu0 %v483
    %775 = vmatmul.mubr.bf16.gmra.mrb[0].mxu0 %v482
    %v776 = vpop.f32.mrb[0].mxu0
    %v777 = vadd.f32 0.0, %v776
    %v778 = vpop.f32.mrb[0].mxu0
    %v779 = vpop.f32.mrb[0].mxu0
    %v780 = vadd.f32 0.0, %v779
    %v781 = vpop.f32.mrb[0].mxu0
    %782 = vmatprep.mubr.bf16.mxu0 %v485
    %783 = vmatmul.mubr.bf16.gmra.mrb[0].mxu0 %v484
    %v784 = vpop.f32.mrb[0].mxu0
    %v785 = vadd.f32 0.0, %v784
    %v786 = vpop.f32.mrb[0].mxu0
    %v787 = vpop.f32.mrb[0].mxu0
    %v788 = vadd.f32 0.0, %v787
    %v789 = vpop.f32.mrb[0].mxu0
    %790 = vmatprep.mubr.bf16.mxu0 %v487
    %791 = vmatmul.mubr.bf16.gmra.mrb[0].mxu0 %v486
    %v792 = vpop.f32.mrb[0].mxu0
    %v793 = vadd.f32 0.0, %v792
    %v794 = vpop.f32.mrb[0].mxu0
    %v795 = vpop.f32.mrb[0].mxu0
    %v796 = vadd.f32 0.0, %v795
    %v797 = vpop.f32.mrb[0].mxu0
    %798 = vmatprep.mubr.bf16.mxu0 %v489
    %799 = vmatmul.mubr.bf16.gmra.mrb[0].mxu0 %v488
    %v800 = vpop.f32.mrb[0].mxu0
    %v801 = vadd.f32 0.0, %v800
    %v802 = vpop.f32.mrb[0].mxu0
    %v803 = vpop.f32.mrb[0].mxu0
    %v804 = vadd.f32 0.0, %v803
    %v805 = vpop.f32.mrb[0].mxu0
    %806 = vmatprep.mubr.bf16.mxu0 %v491
    %807 = vmatmul.mubr.bf16.gmra.mrb[0].mxu0 %v490
    %v808 = vpop.f32.mrb[0].mxu0
    %v809 = vadd.f32 0.0, %v808
    %v810 = vpop.f32.mrb[0].mxu0
    %v811 = vpop.f32.mrb[0].mxu0
    %v812 = vadd.f32 0.0, %v811
    %v813 = vpop.f32.mrb[0].mxu0
    %814 = vmatprep.mubr.bf16.mxu0 %v493
    %815 = vmatmul.mubr.bf16.gmra.mrb[0].mxu0 %v492
    %v816 = vpop.f32.mrb[0].mxu0
    %v817 = vadd.f32 0.0, %v816
    %v818 = vpop.f32.mrb[0].mxu0
    %v819 = vpop.f32.mrb[0].mxu0
    %v820 = vadd.f32 0.0, %v819
    %v821 = vpop.f32.mrb[0].mxu0
    %822 = vmatprep.mubr.bf16.mxu0 %v495
    %823 = vmatmul.mubr.bf16.gmra.mrb[0].mxu0 %v494
    %v824 = vpop.f32.mrb[0].mxu0
    %v825 = vadd.f32 0.0, %v824
    %v826 = vpop.f32.mrb[0].mxu0
    %v827 = vpop.f32.mrb[0].mxu0
    %v828 = vadd.f32 0.0, %v827
    %v829 = vpop.f32.mrb[0].mxu0
    %830 = vmatprep.mubr.bf16.mxu0 %v497
    %831 = vmatmul.mubr.bf16.gmra.mrb[0].mxu0 %v496
    %v832 = vpop.f32.mrb[0].mxu0
    %v833 = vadd.f32 0.0, %v832
    %v834 = vpop.f32.mrb[0].mxu0
    %v835 = vpop.f32.mrb[0].mxu0
    %v836 = vadd.f32 0.0, %v835
    %v837 = vpop.f32.mrb[0].mxu0
    %838 = vmatprep.mubr.bf16.mxu0 %v499
    %839 = vmatmul.mubr.bf16.gmra.mrb[0].mxu0 %v498
    %v840 = vpop.f32.mrb[0].mxu0
    %v841 = vadd.f32 0.0, %v840
    %v842 = vpop.f32.mrb[0].mxu0
    %v843 = vpop.f32.mrb[0].mxu0
    %v844 = vadd.f32 0.0, %v843
    %v845 = vpop.f32.mrb[0].mxu0
    %846 = vmatprep.mubr.bf16.mxu0 %v501
    %847 = vmatmul.mubr.bf16.gmra.mrb[0].mxu0 %v500
    %v848 = vpop.f32.mrb[0].mxu0
    %v849 = vadd.f32 0.0, %v848
    %v850 = vpop.f32.mrb[0].mxu0
    %v851 = vpop.f32.mrb[0].mxu0
    %v852 = vadd.f32 0.0, %v851
    %v853 = vpop.f32.mrb[0].mxu0
    %854 = vmatprep.mubr.bf16.mxu0 %v503
    %855 = vmatmul.mubr.bf16.gmra.mrb[0].mxu0 %v502
    %v856 = vpop.f32.mrb[0].mxu0
    %v857 = vadd.f32 0.0, %v856
    %v858 = vpop.f32.mrb[0].mxu0
    %v859 = vpop.f32.mrb[0].mxu0
    %v860 = vadd.f32 0.0, %v859
    %v861 = vpop.f32.mrb[0].mxu0
    %862 = vmatprep.mubr.bf16.mxu0 %v505
    %863 = vmatmul.mubr.bf16.gmra.mrb[0].mxu0 %v504
    %v864 = vpop.f32.mrb[0].mxu0
    %v865 = vadd.f32 0.0, %v864
    %v866 = vpop.f32.mrb[0].mxu0
    %v867 = vpop.f32.mrb[0].mxu0
    %v868 = vadd.f32 0.0, %v867
    %v869 = vpop.f32.mrb[0].mxu0
    %870 = vmatprep.mubr.bf16.mxu0 %v507
    %871 = vmatmul.mubr.bf16.gmra.mrb[0].mxu0 %v506
    %v872 = vpop.f32.mrb[0].mxu0
    %v873 = vadd.f32 0.0, %v872
    %v874 = vpop.f32.mrb[0].mxu0
    %v875 = vpop.f32.mrb[0].mxu0
    %v876 = vadd.f32 0.0, %v875
    %v877 = vpop.f32.mrb[0].mxu0
    %878 = vmatprep.mubr.bf16.mxu0 %v509
    %879 = vmatmul.mubr.bf16.gmra.mrb[0].mxu0 %v508
    %v880 = vpop.f32.mrb[0].mxu0
    %v881 = vadd.f32 0.0, %v880
    %v882 = vpop.f32.mrb[0].mxu0
    %v883 = vpop.f32.mrb[0].mxu0
    %v884 = vadd.f32 0.0, %v883
    %v885 = vpop.f32.mrb[0].mxu0
    %886 = vmatprep.mubr.bf16.mxu0 %v511
    %887 = vmatmul.mubr.bf16.gmra.mrb[0].mxu0 %v510
    %v888 = vpop.f32.mrb[0].mxu0
    %v889 = vadd.f32 0.0, %v888
    %v890 = vpop.f32.mrb[0].mxu0
    %v891 = vpop.f32.mrb[0].mxu0
    %v892 = vadd.f32 0.0, %v891
    %v893 = vpop.f32.mrb[0].mxu0
    %894 = vmatprep.mubr.bf16.mxu0 %v513
    %895 = vmatmul.mubr.bf16.gmra.mrb[0].mxu0 %v512
    %v896 = vpop.f32.mrb[0].mxu0
    %v897 = vadd.f32 0.0, %v896
    %v898 = vpop.f32.mrb[0].mxu0
    %v899 = vpop.f32.mrb[0].mxu0
    %v900 = vadd.f32 0.0, %v899
    %v901 = vpop.f32.mrb[0].mxu0
    %902 = vmatprep.mubr.bf16.mxu0 %v515
    %903 = vmatmul.mubr.bf16.gmra.mrb[0].mxu0 %v514
    %v904 = vpop.f32.mrb[0].mxu0
    %v905 = vadd.f32 0.0, %v904
    %v906 = vpop.f32.mrb[0].mxu0
    %v907 = vpop.f32.mrb[0].mxu0
    %v908 = vadd.f32 0.0, %v907
    %v909 = vpop.f32.mrb[0].mxu0
    %910 = vmatprep.mubr.bf16.mxu0 %v517
    %911 = vmatmul.mubr.bf16.gmra.mrb[0].mxu0 %v516
    %v912 = vpop.f32.mrb[0].mxu0
    %v913 = vadd.f32 0.0, %v912
    %v914 = vpop.f32.mrb[0].mxu0
    %v915 = vpop.f32.mrb[0].mxu0
    %v916 = vadd.f32 0.0, %v915
    %v917 = vpop.f32.mrb[0].mxu0
    %918 = vmatprep.mubr.bf16.mxu0 %v519
    %919 = vmatmul.mubr.bf16.gmra.mrb[0].mxu0 %v518
    %v920 = vpop.f32.mrb[0].mxu0
    %v921 = vadd.f32 0.0, %v920
    %v922 = vpop.f32.mrb[0].mxu0
    %v923 = vpop.f32.mrb[0].mxu0
    %v924 = vadd.f32 0.0, %v923
    %v925 = vpop.f32.mrb[0].mxu0
    %926 = vmatprep.mubr.bf16.mxu0 %v521
    %927 = vmatmul.mubr.bf16.gmra.mrb[0].mxu0 %v520
    %v928 = vpop.f32.mrb[0].mxu0
    %v929 = vadd.f32 0.0, %v928
    %v930 = vpop.f32.mrb[0].mxu0
    %v931 = vpop.f32.mrb[0].mxu0
    %v932 = vadd.f32 0.0, %v931
    %v933 = vpop.f32.mrb[0].mxu0
    %934 = vmatprep.mubr.bf16.mxu0 %v523
    %935 = vmatmul.mubr.bf16.gmra.mrb[0].mxu0 %v522
    %v936 = vpop.f32.mrb[0].mxu0
    %v937 = vadd.f32 0.0, %v936
    %v938 = vpop.f32.mrb[0].mxu0
    %v939 = vpop.f32.mrb[0].mxu0
    %v940 = vadd.f32 0.0, %v939
    %v941 = vpop.f32.mrb[0].mxu0
    %942 = vmatprep.mubr.bf16.mxu0 %v525
    %943 = vmatmul.mubr.bf16.gmra.mrb[0].mxu0 %v524
    %v944 = vpop.f32.mrb[0].mxu0
    %v945 = vadd.f32 0.0, %v944
    %v946 = vpop.f32.mrb[0].mxu0
    %v947 = vpop.f32.mrb[0].mxu0
    %v948 = vadd.f32 0.0, %v947
    %v949 = vpop.f32.mrb[0].mxu0
    %950 = vmatprep.mubr.bf16.mxu0 %v527
    %951 = vmatmul.mubr.bf16.gmra.mrb[0].mxu0 %v526
    %v952 = vpop.f32.mrb[0].mxu0
    %v953 = vadd.f32 0.0, %v952
    %v954 = vpop.f32.mrb[0].mxu0
    %v955 = vpop.f32.mrb[0].mxu0
    %v956 = vadd.f32 0.0, %v955
    %v957 = vpop.f32.mrb[0].mxu0
    %958 = vmatprep.mubr.bf16.mxu0 %v529
    %959 = vmatmul.mubr.bf16.gmra.mrb[0].mxu0 %v528
    %v960 = vpop.f32.mrb[0].mxu0
    %v961 = vadd.f32 0.0, %v960
    %v962 = vpop.f32.mrb[0].mxu0
    %v963 = vpop.f32.mrb[0].mxu0
    %v964 = vadd.f32 0.0, %v963
    %v965 = vpop.f32.mrb[0].mxu0
    %966 = vmatprep.mubr.bf16.mxu0 %v531
    %967 = vmatmul.mubr.bf16.gmra.mrb[0].mxu0 %v530
    %v968 = vpop.f32.mrb[0].mxu0
    %v969 = vadd.f32 0.0, %v968
    %v970 = vpop.f32.mrb[0].mxu0
    %v971 = vpop.f32.mrb[0].mxu0
    %v972 = vadd.f32 0.0, %v971
    %v973 = vpop.f32.mrb[0].mxu0
    %974 = vmatprep.mubr.bf16.mxu0 %v533
    %975 = vmatmul.mubr.bf16.gmra.mrb[0].mxu0 %v532
    %v976 = vpop.f32.mrb[0].mxu0
    %v977 = vadd.f32 0.0, %v976
    %v978 = vpop.f32.mrb[0].mxu0
    %v979 = vpop.f32.mrb[0].mxu0
    %v980 = vadd.f32 0.0, %v979
    %v981 = vpop.f32.mrb[0].mxu0
    %982 = vdwg.mxu0
    %v983 = vadd.f32 %v150, %v729
    %v984 = vadd.f32 %v151, %v732
    %v985 = vadd.f32 %v152, %v737
    %v986 = vadd.f32 %v153, %v740
    %v987 = vadd.f32 %v154, %v745
    %v988 = vadd.f32 %v155, %v748
    %v989 = vadd.f32 %v156, %v753
    %v990 = vadd.f32 %v157, %v756
    %v991 = vadd.f32 %v158, %v761
    %v992 = vadd.f32 %v159, %v764
    %v993 = vadd.f32 %v160, %v769
    %v994 = vadd.f32 %v161, %v772
    %v995 = vadd.f32 %v162, %v777
    %v996 = vadd.f32 %v163, %v780
    %v997 = vadd.f32 %v164, %v785
    %v998 = vadd.f32 %v165, %v788
    %v999 = vadd.f32 %v166, %v793
    %v1000 = vadd.f32 %v167, %v796
    %v1001 = vadd.f32 %v168, %v801
    %v1002 = vadd.f32 %v169, %v804
    %v1003 = vadd.f32 %v170, %v809
    %v1004 = vadd.f32 %v171, %v812
    %v1005 = vadd.f32 %v172, %v817
    %v1006 = vadd.f32 %v173, %v820
    %v1007 = vadd.f32 %v174, %v825
    %v1008 = vadd.f32 %v175, %v828
    %v1009 = vadd.f32 %v176, %v833
    %v1010 = vadd.f32 %v177, %v836
    %v1011 = vadd.f32 %v178, %v841
    %v1012 = vadd.f32 %v179, %v844
    %v1013 = vadd.f32 %v180, %v849
    %v1014 = vadd.f32 %v181, %v852
    %v1015 = vadd.f32 %v182, %v857
    %v1016 = vadd.f32 %v183, %v860
    %v1017 = vadd.f32 %v184, %v865
    %v1018 = vadd.f32 %v185, %v868
    %v1019 = vadd.f32 %v186, %v873
    %v1020 = vadd.f32 %v187, %v876
    %v1021 = vadd.f32 %v188, %v881
    %v1022 = vadd.f32 %v189, %v884
    %v1023 = vadd.f32 %v190, %v889
    %v1024 = vadd.f32 %v191, %v892
    %v1025 = vadd.f32 %v192, %v897
    %v1026 = vadd.f32 %v193, %v900
    %v1027 = vadd.f32 %v194, %v905
    %v1028 = vadd.f32 %v195, %v908
    %v1029 = vadd.f32 %v196, %v913
    %v1030 = vadd.f32 %v197, %v916
    %v1031 = vadd.f32 %v198, %v921
    %v1032 = vadd.f32 %v199, %v924
    %v1033 = vadd.f32 %v200, %v929
    %v1034 = vadd.f32 %v201, %v932
    %v1035 = vadd.f32 %v202, %v937
    %v1036 = vadd.f32 %v203, %v940
    %v1037 = vadd.f32 %v204, %v945
    %v1038 = vadd.f32 %v205, %v948
    %v1039 = vadd.f32 %v206, %v953
    %v1040 = vadd.f32 %v207, %v956
    %v1041 = vadd.f32 %v208, %v961
    %v1042 = vadd.f32 %v209, %v964
    %v1043 = vadd.f32 %v210, %v969
    %v1044 = vadd.f32 %v211, %v972
    %v1045 = vadd.f32 %v212, %v977
    %v1046 = vadd.f32 %v213, %v980
    %1047 = vst [vmem:[#allocation2] sm:$0xff] %v983
    %1048 = vst [vmem:[#allocation2 + $0x8] sm:$0xff] %v984
    %1049 = vst [vmem:[#allocation2 + $0x10] sm:$0xff] %v985
    %1050 = vst [vmem:[#allocation2 + $0x18] sm:$0xff] %v986
    %1051 = vst [vmem:[#allocation2 + $0x20] sm:$0xff] %v987
    %1052 = vst [vmem:[#allocation2 + $0x28] sm:$0xff] %v988
    %1053 = vst [vmem:[#allocation2 + $0x30] sm:$0xff] %v989
    %1054 = vst [vmem:[#allocation2 + $0x38] sm:$0xff] %v990
    %1055 = vst [vmem:[#allocation2 + $0x40] sm:$0xff] %v991
    %1056 = vst [vmem:[#allocation2 + $0x48] sm:$0xff] %v992
    %1057 = vst [vmem:[#allocation2 + $0x50] sm:$0xff] %v993
    %1058 = vst [vmem:[#allocation2 + $0x58] sm:$0xff] %v994
    %1059 = vst [vmem:[#allocation2 + $0x60] sm:$0xff] %v995
    %1060 = vst [vmem:[#allocation2 + $0x68] sm:$0xff] %v996
    %1061 = vst [vmem:[#allocation2 + $0x70] sm:$0xff] %v997
    %1062 = vst [vmem:[#allocation2 + $0x78] sm:$0xff] %v998
    %1063 = vst [vmem:[#allocation2 + $0x80] sm:$0xff] %v999
    %1064 = vst [vmem:[#allocation2 + $0x88] sm:$0xff] %v1000
    %1065 = vst [vmem:[#allocation2 + $0x90] sm:$0xff] %v1001
    %1066 = vst [vmem:[#allocation2 + $0x98] sm:$0xff] %v1002
    %1067 = vst [vmem:[#allocation2 + $0xa0] sm:$0xff] %v1003
    %1068 = vst [vmem:[#allocation2 + $0xa8] sm:$0xff] %v1004
    %1069 = vst [vmem:[#allocation2 + $0xb0] sm:$0xff] %v1005
    %1070 = vst [vmem:[#allocation2 + $0xb8] sm:$0xff] %v1006
    %1071 = vst [vmem:[#allocation2 + $0xc0] sm:$0xff] %v1007
    %1072 = vst [vmem:[#allocation2 + $0xc8] sm:$0xff] %v1008
    %1073 = vst [vmem:[#allocation2 + $0xd0] sm:$0xff] %v1009
    %1074 = vst [vmem:[#allocation2 + $0xd8] sm:$0xff] %v1010
    %1075 = vst [vmem:[#allocation2 + $0xe0] sm:$0xff] %v1011
    %1076 = vst [vmem:[#allocation2 + $0xe8] sm:$0xff] %v1012
    %1077 = vst [vmem:[#allocation2 + $0xf0] sm:$0xff] %v1013
    %1078 = vst [vmem:[#allocation2 + $0xf8] sm:$0xff] %v1014
    %1079 = vst [vmem:[#allocation2 + $0x100] sm:$0xff] %v1015
    %1080 = vst [vmem:[#allocation2 + $0x108] sm:$0xff] %v1016
    %1081 = vst [vmem:[#allocation2 + $0x110] sm:$0xff] %v1017
    %1082 = vst [vmem:[#allocation2 + $0x118] sm:$0xff] %v1018
    %1083 = vst [vmem:[#allocation2 + $0x120] sm:$0xff] %v1019
    %1084 = vst [vmem:[#allocation2 + $0x128] sm:$0xff] %v1020
    %1085 = vst [vmem:[#allocation2 + $0x130] sm:$0xff] %v1021
    %1086 = vst [vmem:[#allocation2 + $0x138] sm:$0xff] %v1022
    %1087 = vst [vmem:[#allocation2 + $0x140] sm:$0xff] %v1023
    %1088 = vst [vmem:[#allocation2 + $0x148] sm:$0xff] %v1024
    %1089 = vst [vmem:[#allocation2 + $0x150] sm:$0xff] %v1025
    %1090 = vst [vmem:[#allocation2 + $0x158] sm:$0xff] %v1026
    %1091 = vst [vmem:[#allocation2 + $0x160] sm:$0xff] %v1027
    %1092 = vst [vmem:[#allocation2 + $0x168] sm:$0xff] %v1028
    %1093 = vst [vmem:[#allocation2 + $0x170] sm:$0xff] %v1029
    %1094 = vst [vmem:[#allocation2 + $0x178] sm:$0xff] %v1030
    %1095 = vst [vmem:[#allocation2 + $0x180] sm:$0xff] %v1031
    %1096 = vst [vmem:[#allocation2 + $0x188] sm:$0xff] %v1032
    %1097 = vst [vmem:[#allocation2 + $0x190] sm:$0xff] %v1033
    %1098 = vst [vmem:[#allocation2 + $0x198] sm:$0xff] %v1034
    %1099 = vst [vmem:[#allocation2 + $0x1a0] sm:$0xff] %v1035
    %1100 = vst [vmem:[#allocation2 + $0x1a8] sm:$0xff] %v1036
    %1101 = vst [vmem:[#allocation2 + $0x1b0] sm:$0xff] %v1037
    %1102 = vst [vmem:[#allocation2 + $0x1b8] sm:$0xff] %v1038
    %1103 = vst [vmem:[#allocation2 + $0x1c0] sm:$0xff] %v1039
    %1104 = vst [vmem:[#allocation2 + $0x1c8] sm:$0xff] %v1040
    %1105 = vst [vmem:[#allocation2 + $0x1d0] sm:$0xff] %v1041
    %1106 = vst [vmem:[#allocation2 + $0x1d8] sm:$0xff] %v1042
    %1107 = vst [vmem:[#allocation2 + $0x1e0] sm:$0xff] %v1043
    %1108 = vst [vmem:[#allocation2 + $0x1e8] sm:$0xff] %v1044
    %1109 = vst [vmem:[#allocation2 + $0x1f0] sm:$0xff] %v1045
    %1110 = vst [vmem:[#allocation2 + $0x1f8] sm:$0xff] %v1046
    // Predicated region
    $region22: #{tpu_custom_call.1} parent=1 // pred_check
      %p1111 = pneg %p45
    $region23: #{tpu_custom_call.1} parent=1 // pred_check_branch
      %1113 = sbr.rel (%p1111) target = $region25
    $region24: #{tpu_custom_call.1} parent=1 // pred_region
      %v1114 = vld [vmem:[#allocation2] sm:$0xff]
      %v1115 = vld [vmem:[#allocation2 + $0x8] sm:$0xff]
      %v1116 = vld [vmem:[#allocation2 + $0x10] sm:$0xff]
      %v1117 = vld [vmem:[#allocation2 + $0x18] sm:$0xff]
      %v1118 = vld [vmem:[#allocation2 + $0x20] sm:$0xff]
      %v1119 = vld [vmem:[#allocation2 + $0x28] sm:$0xff]
      %v1120 = vld [vmem:[#allocation2 + $0x30] sm:$0xff]
      %v1121 = vld [vmem:[#allocation2 + $0x38] sm:$0xff]
      %v1122 = vld [vmem:[#allocation2 + $0x40] sm:$0xff]
      %v1123 = vld [vmem:[#allocation2 + $0x48] sm:$0xff]
      %v1124 = vld [vmem:[#allocation2 + $0x50] sm:$0xff]
      %v1125 = vld [vmem:[#allocation2 + $0x58] sm:$0xff]
      %v1126 = vld [vmem:[#allocation2 + $0x60] sm:$0xff]
      %v1127 = vld [vmem:[#allocation2 + $0x68] sm:$0xff]
      %v1128 = vld [vmem:[#allocation2 + $0x70] sm:$0xff]
      %v1129 = vld [vmem:[#allocation2 + $0x78] sm:$0xff]
      %v1130 = vld [vmem:[#allocation2 + $0x80] sm:$0xff]
      %v1131 = vld [vmem:[#allocation2 + $0x88] sm:$0xff]
      %v1132 = vld [vmem:[#allocation2 + $0x90] sm:$0xff]
      %v1133 = vld [vmem:[#allocation2 + $0x98] sm:$0xff]
      %v1134 = vld [vmem:[#allocation2 + $0xa0] sm:$0xff]
      %v1135 = vld [vmem:[#allocation2 + $0xa8] sm:$0xff]
      %v1136 = vld [vmem:[#allocation2 + $0xb0] sm:$0xff]
      %v1137 = vld [vmem:[#allocation2 + $0xb8] sm:$0xff]
      %v1138 = vld [vmem:[#allocation2 + $0xc0] sm:$0xff]
      %v1139 = vld [vmem:[#allocation2 + $0xc8] sm:$0xff]
      %v1140 = vld [vmem:[#allocation2 + $0xd0] sm:$0xff]
      %v1141 = vld [vmem:[#allocation2 + $0xd8] sm:$0xff]
      %v1142 = vld [vmem:[#allocation2 + $0xe0] sm:$0xff]
      %v1143 = vld [vmem:[#allocation2 + $0xe8] sm:$0xff]
      %v1144 = vld [vmem:[#allocation2 + $0xf0] sm:$0xff]
      %v1145 = vld [vmem:[#allocation2 + $0xf8] sm:$0xff]
      %v1146 = vld [vmem:[#allocation2 + $0x100] sm:$0xff]
      %v1147 = vld [vmem:[#allocation2 + $0x108] sm:$0xff]
      %v1148 = vld [vmem:[#allocation2 + $0x110] sm:$0xff]
      %v1149 = vld [vmem:[#allocation2 + $0x118] sm:$0xff]
      %v1150 = vld [vmem:[#allocation2 + $0x120] sm:$0xff]
      %v1151 = vld [vmem:[#allocation2 + $0x128] sm:$0xff]
      %v1152 = vld [vmem:[#allocation2 + $0x130] sm:$0xff]
      %v1153 = vld [vmem:[#allocation2 + $0x138] sm:$0xff]
      %v1154 = vld [vmem:[#allocation2 + $0x140] sm:$0xff]
      %v1155 = vld [vmem:[#allocation2 + $0x148] sm:$0xff]
      %v1156 = vld [vmem:[#allocation2 + $0x150] sm:$0xff]
      %v1157 = vld [vmem:[#allocation2 + $0x158] sm:$0xff]
      %v1158 = vld [vmem:[#allocation2 + $0x160] sm:$0xff]
      %v1159 = vld [vmem:[#allocation2 + $0x168] sm:$0xff]
      %v1160 = vld [vmem:[#allocation2 + $0x170] sm:$0xff]
      %v1161 = vld [vmem:[#allocation2 + $0x178] sm:$0xff]
      %v1162 = vld [vmem:[#allocation2 + $0x180] sm:$0xff]
      %v1163 = vld [vmem:[#allocation2 + $0x188] sm:$0xff]
      %v1164 = vld [vmem:[#allocation2 + $0x190] sm:$0xff]
      %v1165 = vld [vmem:[#allocation2 + $0x198] sm:$0xff]
      %v1166 = vld [vmem:[#allocation2 + $0x1a0] sm:$0xff]
      %v1167 = vld [vmem:[#allocation2 + $0x1a8] sm:$0xff]
      %v1168 = vld [vmem:[#allocation2 + $0x1b0] sm:$0xff]
      %v1169 = vld [vmem:[#allocation2 + $0x1b8] sm:$0xff]
      %v1170 = vld [vmem:[#allocation2 + $0x1c0] sm:$0xff]
      %v1171 = vld [vmem:[#allocation2 + $0x1c8] sm:$0xff]
      %v1172 = vld [vmem:[#allocation2 + $0x1d0] sm:$0xff]
      %v1173 = vld [vmem:[#allocation2 + $0x1d8] sm:$0xff]
      %v1174 = vld [vmem:[#allocation2 + $0x1e0] sm:$0xff]
      %v1175 = vld [vmem:[#allocation2 + $0x1e8] sm:$0xff]
      %v1176 = vld [vmem:[#allocation2 + $0x1f0] sm:$0xff]
      %v1177 = vld [vmem:[#allocation2 + $0x1f8] sm:$0xff]
      %v1178 = vadd.f32 %v1114, %v1115
      %v1179 = vadd.f32 %v1178, %v1116
      %v1180 = vadd.f32 %v1179, %v1117
      %v1181 = vadd.f32 %v1180, %v1118
      %v1182 = vadd.f32 %v1181, %v1119
      %v1183 = vadd.f32 %v1182, %v1120
      %v1184 = vadd.f32 %v1183, %v1121
      %v1185 = vadd.f32 %v1184, %v1122
      %v1186 = vadd.f32 %v1185, %v1123
      %v1187 = vadd.f32 %v1186, %v1124
      %v1188 = vadd.f32 %v1187, %v1125
      %v1189 = vadd.f32 %v1188, %v1126
      %v1190 = vadd.f32 %v1189, %v1127
      %v1191 = vadd.f32 %v1190, %v1128
      %v1192 = vadd.f32 %v1191, %v1129
      %v1193 = vadd.f32 %v1192, %v1130
      %v1194 = vadd.f32 %v1193, %v1131
      %v1195 = vadd.f32 %v1194, %v1132
      %v1196 = vadd.f32 %v1195, %v1133
      %v1197 = vadd.f32 %v1196, %v1134
      %v1198 = vadd.f32 %v1197, %v1135
      %v1199 = vadd.f32 %v1198, %v1136
      %v1200 = vadd.f32 %v1199, %v1137
      %v1201 = vadd.f32 %v1200, %v1138
      %v1202 = vadd.f32 %v1201, %v1139
      %v1203 = vadd.f32 %v1202, %v1140
      %v1204 = vadd.f32 %v1203, %v1141
      %v1205 = vadd.f32 %v1204, %v1142
      %v1206 = vadd.f32 %v1205, %v1143
      %v1207 = vadd.f32 %v1206, %v1144
      %v1208 = vadd.f32 %v1207, %v1145
      %v1209 = vadd.f32 %v1208, %v1146
      %v1210 = vadd.f32 %v1209, %v1147
      %v1211 = vadd.f32 %v1210, %v1148
      %v1212 = vadd.f32 %v1211, %v1149
      %v1213 = vadd.f32 %v1212, %v1150
      %v1214 = vadd.f32 %v1213, %v1151
      %v1215 = vadd.f32 %v1214, %v1152
      %v1216 = vadd.f32 %v1215, %v1153
      %v1217 = vadd.f32 %v1216, %v1154
      %v1218 = vadd.f32 %v1217, %v1155
      %v1219 = vadd.f32 %v1218, %v1156
      %v1220 = vadd.f32 %v1219, %v1157
      %v1221 = vadd.f32 %v1220, %v1158
      %v1222 = vadd.f32 %v1221, %v1159
      %v1223 = vadd.f32 %v1222, %v1160
      %v1224 = vadd.f32 %v1223, %v1161
      %v1225 = vadd.f32 %v1224, %v1162
      %v1226 = vadd.f32 %v1225, %v1163
      %v1227 = vadd.f32 %v1226, %v1164
      %v1228 = vadd.f32 %v1227, %v1165
      %v1229 = vadd.f32 %v1228, %v1166
      %v1230 = vadd.f32 %v1229, %v1167
      %v1231 = vadd.f32 %v1230, %v1168
      %v1232 = vadd.f32 %v1231, %v1169
      %v1233 = vadd.f32 %v1232, %v1170
      %v1234 = vadd.f32 %v1233, %v1171
      %v1235 = vadd.f32 %v1234, %v1172
      %v1236 = vadd.f32 %v1235, %v1173
      %v1237 = vadd.f32 %v1236, %v1174
      %v1238 = vadd.f32 %v1237, %v1175
      %v1239 = vadd.f32 %v1238, %v1176
      %v1240 = vadd.f32 %v1239, %v1177
      %v1241 = vrot.slane %v1240, 4
      %v1242 = vadd.f32 %v1240, %v1241
      %v1243 = vrot.slane %v1242, 2
      %v1244 = vadd.f32 %v1242, %v1243
      %v1245 = vrot.slane %v1244, 1
      %v1246 = vadd.f32 %v1244, %v1245
      %1247 = vst [vmem:[#allocation9] sm:$0x1] %v1246
      %v1248 = vmul.f32 %v1114, %v1114
      %v1249 = vmul.f32 %v1115, %v1115
      %v1250 = vmul.f32 %v1116, %v1116
      %v1251 = vmul.f32 %v1117, %v1117
      %v1252 = vmul.f32 %v1118, %v1118
      %v1253 = vmul.f32 %v1119, %v1119
      %v1254 = vmul.f32 %v1120, %v1120
      %v1255 = vmul.f32 %v1121, %v1121
      %v1256 = vmul.f32 %v1122, %v1122
      %v1257 = vmul.f32 %v1123, %v1123
      %v1258 = vmul.f32 %v1124, %v1124
      %v1259 = vmul.f32 %v1125, %v1125
      %v1260 = vmul.f32 %v1126, %v1126
      %v1261 = vmul.f32 %v1127, %v1127
      %v1262 = vmul.f32 %v1128, %v1128
      %v1263 = vmul.f32 %v1129, %v1129
      %v1264 = vmul.f32 %v1130, %v1130
      %v1265 = vmul.f32 %v1131, %v1131
      %v1266 = vmul.f32 %v1132, %v1132
      %v1267 = vmul.f32 %v1133, %v1133
      %v1268 = vmul.f32 %v1134, %v1134
      %v1269 = vmul.f32 %v1135, %v1135
      %v1270 = vmul.f32 %v1136, %v1136
      %v1271 = vmul.f32 %v1137, %v1137
      %v1272 = vmul.f32 %v1138, %v1138
      %v1273 = vmul.f32 %v1139, %v1139
      %v1274 = vmul.f32 %v1140, %v1140
      %v1275 = vmul.f32 %v1141, %v1141
      %v1276 = vmul.f32 %v1142, %v1142
      %v1277 = vmul.f32 %v1143, %v1143
      %v1278 = vmul.f32 %v1144, %v1144
      %v1279 = vmul.f32 %v1145, %v1145
      %v1280 = vmul.f32 %v1146, %v1146
      %v1281 = vmul.f32 %v1147, %v1147
      %v1282 = vmul.f32 %v1148, %v1148
      %v1283 = vmul.f32 %v1149, %v1149
      %v1284 = vmul.f32 %v1150, %v1150
      %v1285 = vmul.f32 %v1151, %v1151
      %v1286 = vmul.f32 %v1152, %v1152
      %v1287 = vmul.f32 %v1153, %v1153
      %v1288 = vmul.f32 %v1154, %v1154
      %v1289 = vmul.f32 %v1155, %v1155
      %v1290 = vmul.f32 %v1156, %v1156
      %v1291 = vmul.f32 %v1157, %v1157
      %v1292 = vmul.f32 %v1158, %v1158
      %v1293 = vmul.f32 %v1159, %v1159
      %v1294 = vmul.f32 %v1160, %v1160
      %v1295 = vmul.f32 %v1161, %v1161
      %v1296 = vmul.f32 %v1162, %v1162
      %v1297 = vmul.f32 %v1163, %v1163
      %v1298 = vmul.f32 %v1164, %v1164
      %v1299 = vmul.f32 %v1165, %v1165
      %v1300 = vmul.f32 %v1166, %v1166
      %v1301 = vmul.f32 %v1167, %v1167
      %v1302 = vmul.f32 %v1168, %v1168
      %v1303 = vmul.f32 %v1169, %v1169
      %v1304 = vmul.f32 %v1170, %v1170
      %v1305 = vmul.f32 %v1171, %v1171
      %v1306 = vmul.f32 %v1172, %v1172
      %v1307 = vmul.f32 %v1173, %v1173
      %v1308 = vmul.f32 %v1174, %v1174
      %v1309 = vmul.f32 %v1175, %v1175
      %v1310 = vmul.f32 %v1176, %v1176
      %v1311 = vmul.f32 %v1177, %v1177
      %v1312 = vadd.f32 %v1248, %v1249
      %v1313 = vadd.f32 %v1312, %v1250
      %v1314 = vadd.f32 %v1313, %v1251
      %v1315 = vadd.f32 %v1314, %v1252
      %v1316 = vadd.f32 %v1315, %v1253
      %v1317 = vadd.f32 %v1316, %v1254
      %v1318 = vadd.f32 %v1317, %v1255
      %v1319 = vadd.f32 %v1318, %v1256
      %v1320 = vadd.f32 %v1319, %v1257
      %v1321 = vadd.f32 %v1320, %v1258
      %v1322 = vadd.f32 %v1321, %v1259
      %v1323 = vadd.f32 %v1322, %v1260
      %v1324 = vadd.f32 %v1323, %v1261
      %v1325 = vadd.f32 %v1324, %v1262
      %v1326 = vadd.f32 %v1325, %v1263
      %v1327 = vadd.f32 %v1326, %v1264
      %v1328 = vadd.f32 %v1327, %v1265
      %v1329 = vadd.f32 %v1328, %v1266
      %v1330 = vadd.f32 %v1329, %v1267
      %v1331 = vadd.f32 %v1330, %v1268
      %v1332 = vadd.f32 %v1331, %v1269
      %v1333 = vadd.f32 %v1332, %v1270
      %v1334 = vadd.f32 %v1333, %v1271
      %v1335 = vadd.f32 %v1334, %v1272
      %v1336 = vadd.f32 %v1335, %v1273
      %v1337 = vadd.f32 %v1336, %v1274
      %v1338 = vadd.f32 %v1337, %v1275
      %v1339 = vadd.f32 %v1338, %v1276
      %v1340 = vadd.f32 %v1339, %v1277
      %v1341 = vadd.f32 %v1340, %v1278
      %v1342 = vadd.f32 %v1341, %v1279
      %v1343 = vadd.f32 %v1342, %v1280
      %v1344 = vadd.f32 %v1343, %v1281
      %v1345 = vadd.f32 %v1344, %v1282
      %v1346 = vadd.f32 %v1345, %v1283
      %v1347 = vadd.f32 %v1346, %v1284
      %v1348 = vadd.f32 %v1347, %v1285
      %v1349 = vadd.f32 %v1348, %v1286
      %v1350 = vadd.f32 %v1349, %v1287
      %v1351 = vadd.f32 %v1350, %v1288
      %v1352 = vadd.f32 %v1351, %v1289
      %v1353 = vadd.f32 %v1352, %v1290
      %v1354 = vadd.f32 %v1353, %v1291
      %v1355 = vadd.f32 %v1354, %v1292
      %v1356 = vadd.f32 %v1355, %v1293
      %v1357 = vadd.f32 %v1356, %v1294
      %v1358 = vadd.f32 %v1357, %v1295
      %v1359 = vadd.f32 %v1358, %v1296
      %v1360 = vadd.f32 %v1359, %v1297
      %v1361 = vadd.f32 %v1360, %v1298
      %v1362 = vadd.f32 %v1361, %v1299
      %v1363 = vadd.f32 %v1362, %v1300
      %v1364 = vadd.f32 %v1363, %v1301
      %v1365 = vadd.f32 %v1364, %v1302
      %v1366 = vadd.f32 %v1365, %v1303
      %v1367 = vadd.f32 %v1366, %v1304
      %v1368 = vadd.f32 %v1367, %v1305
      %v1369 = vadd.f32 %v1368, %v1306
      %v1370 = vadd.f32 %v1369, %v1307
      %v1371 = vadd.f32 %v1370, %v1308
      %v1372 = vadd.f32 %v1371, %v1309
      %v1373 = vadd.f32 %v1372, %v1310
      %v1374 = vadd.f32 %v1373, %v1311
      %v1375 = vrot.slane %v1374, 4
      %v1376 = vadd.f32 %v1374, %v1375
      %v1377 = vrot.slane %v1376, 2
      %v1378 = vadd.f32 %v1376, %v1377
      %v1379 = vrot.slane %v1378, 1
      %v1380 = vadd.f32 %v1378, %v1379
      %1381 = vst [vmem:[#allocation11] sm:$0x1] %v1380
      %v1382 = vpack.c.bf16 %v1115, %v1114
      %v1383 = vpack.c.bf16 %v1117, %v1116
      %v1384 = vpack.c.bf16 %v1119, %v1118
      %v1385 = vpack.c.bf16 %v1121, %v1120
      %v1386 = vpack.c.bf16 %v1123, %v1122
      %v1387 = vpack.c.bf16 %v1125, %v1124
      %v1388 = vpack.c.bf16 %v1127, %v1126
      %v1389 = vpack.c.bf16 %v1129, %v1128
      %v1390 = vpack.c.bf16 %v1131, %v1130
      %v1391 = vpack.c.bf16 %v1133, %v1132
      %v1392 = vpack.c.bf16 %v1135, %v1134
      %v1393 = vpack.c.bf16 %v1137, %v1136
      %v1394 = vpack.c.bf16 %v1139, %v1138
      %v1395 = vpack.c.bf16 %v1141, %v1140
      %v1396 = vpack.c.bf16 %v1143, %v1142
      %v1397 = vpack.c.bf16 %v1145, %v1144
      %v1398 = vpack.c.bf16 %v1147, %v1146
      %v1399 = vpack.c.bf16 %v1149, %v1148
      %v1400 = vpack.c.bf16 %v1151, %v1150
      %v1401 = vpack.c.bf16 %v1153, %v1152
      %v1402 = vpack.c.bf16 %v1155, %v1154
      %v1403 = vpack.c.bf16 %v1157, %v1156
      %v1404 = vpack.c.bf16 %v1159, %v1158
      %v1405 = vpack.c.bf16 %v1161, %v1160
      %v1406 = vpack.c.bf16 %v1163, %v1162
      %v1407 = vpack.c.bf16 %v1165, %v1164
      %v1408 = vpack.c.bf16 %v1167, %v1166
      %v1409 = vpack.c.bf16 %v1169, %v1168
      %v1410 = vpack.c.bf16 %v1171, %v1170
      %v1411 = vpack.c.bf16 %v1173, %v1172
      %v1412 = vpack.c.bf16 %v1175, %v1174
      %v1413 = vpack.c.bf16 %v1177, %v1176
      %v1446 = vunpack.c.l.b16 %v1382
      %v1447 = vunpack.c.h.b16 %v1382
      %v1448 = vunpack.c.l.b16 %v1383
      %v1449 = vunpack.c.h.b16 %v1383
      %v1450 = vunpack.c.l.b16 %v1384
      %v1451 = vunpack.c.h.b16 %v1384
      %v1452 = vunpack.c.l.b16 %v1385
      %v1453 = vunpack.c.h.b16 %v1385
      %v1454 = vunpack.c.l.b16 %v1386
      %v1455 = vunpack.c.h.b16 %v1386
      %v1456 = vunpack.c.l.b16 %v1387
      %v1457 = vunpack.c.h.b16 %v1387
      %v1458 = vunpack.c.l.b16 %v1388
      %v1459 = vunpack.c.h.b16 %v1388
      %v1460 = vunpack.c.l.b16 %v1389
      %v1461 = vunpack.c.h.b16 %v1389
      %v1462 = vunpack.c.l.b16 %v1390
      %v1463 = vunpack.c.h.b16 %v1390
      %v1464 = vunpack.c.l.b16 %v1391
      %v1465 = vunpack.c.h.b16 %v1391
      %v1466 = vunpack.c.l.b16 %v1392
      %v1467 = vunpack.c.h.b16 %v1392
      %v1468 = vunpack.c.l.b16 %v1393
      %v1469 = vunpack.c.h.b16 %v1393
      %v1470 = vunpack.c.l.b16 %v1394
      %v1471 = vunpack.c.h.b16 %v1394
      %v1472 = vunpack.c.l.b16 %v1395
      %v1473 = vunpack.c.h.b16 %v1395
      %v1474 = vunpack.c.l.b16 %v1396
      %v1475 = vunpack.c.h.b16 %v1396
      %v1476 = vunpack.c.l.b16 %v1397
      %v1477 = vunpack.c.h.b16 %v1397
      %v1478 = vunpack.c.l.b16 %v1398
      %v1479 = vunpack.c.h.b16 %v1398
      %v1480 = vunpack.c.l.b16 %v1399
      %v1481 = vunpack.c.h.b16 %v1399
      %v1482 = vunpack.c.l.b16 %v1400
      %v1483 = vunpack.c.h.b16 %v1400
      %v1484 = vunpack.c.l.b16 %v1401
      %v1485 = vunpack.c.h.b16 %v1401
      %v1486 = vunpack.c.l.b16 %v1402
      %v1487 = vunpack.c.h.b16 %v1402
      %v1488 = vunpack.c.l.b16 %v1403
      %v1489 = vunpack.c.h.b16 %v1403
      %v1490 = vunpack.c.l.b16 %v1404
      %v1491 = vunpack.c.h.b16 %v1404
      %v1492 = vunpack.c.l.b16 %v1405
      %v1493 = vunpack.c.h.b16 %v1405
      %v1494 = vunpack.c.l.b16 %v1406
      %v1495 = vunpack.c.h.b16 %v1406
      %v1496 = vunpack.c.l.b16 %v1407
      %v1497 = vunpack.c.h.b16 %v1407
      %v1498 = vunpack.c.l.b16 %v1408
      %v1499 = vunpack.c.h.b16 %v1408
      %v1500 = vunpack.c.l.b16 %v1409
      %v1501 = vunpack.c.h.b16 %v1409
      %v1502 = vunpack.c.l.b16 %v1410
      %v1503 = vunpack.c.h.b16 %v1410
      %v1504 = vunpack.c.l.b16 %v1411
      %v1505 = vunpack.c.h.b16 %v1411
      %v1506 = vunpack.c.l.b16 %v1412
      %v1507 = vunpack.c.h.b16 %v1412
      %v1508 = vunpack.c.l.b16 %v1413
      %v1509 = vunpack.c.h.b16 %v1413
      %v1510 = vpack.c.b16 %v1446, %v1446
      %v1511 = vpack.c.b16 %v1447, %v1447
      %v1512 = vpack.c.b16 %v1448, %v1448
      %v1513 = vpack.c.b16 %v1449, %v1449
      %v1514 = vpack.c.b16 %v1450, %v1450
      %v1515 = vpack.c.b16 %v1451, %v1451
      %v1516 = vpack.c.b16 %v1452, %v1452
      %v1517 = vpack.c.b16 %v1453, %v1453
      %v1518 = vpack.c.b16 %v1454, %v1454
      %v1519 = vpack.c.b16 %v1455, %v1455
      %v1520 = vpack.c.b16 %v1456, %v1456
      %v1521 = vpack.c.b16 %v1457, %v1457
      %v1522 = vpack.c.b16 %v1458, %v1458
      %v1523 = vpack.c.b16 %v1459, %v1459
      %v1524 = vpack.c.b16 %v1460, %v1460
      %v1525 = vpack.c.b16 %v1461, %v1461
      %v1526 = vpack.c.b16 %v1462, %v1462
      %v1527 = vpack.c.b16 %v1463, %v1463
      %v1528 = vpack.c.b16 %v1464, %v1464
      %v1529 = vpack.c.b16 %v1465, %v1465
      %v1530 = vpack.c.b16 %v1466, %v1466
      %v1531 = vpack.c.b16 %v1467, %v1467
      %v1532 = vpack.c.b16 %v1468, %v1468
      %v1533 = vpack.c.b16 %v1469, %v1469
      %v1534 = vpack.c.b16 %v1470, %v1470
      %v1535 = vpack.c.b16 %v1471, %v1471
      %v1536 = vpack.c.b16 %v1472, %v1472
      %v1537 = vpack.c.b16 %v1473, %v1473
      %v1538 = vpack.c.b16 %v1474, %v1474
      %v1539 = vpack.c.b16 %v1475, %v1475
      %v1540 = vpack.c.b16 %v1476, %v1476
      %v1541 = vpack.c.b16 %v1477, %v1477
      %v1542 = vpack.c.b16 %v1478, %v1478
      %v1543 = vpack.c.b16 %v1479, %v1479
      %v1544 = vpack.c.b16 %v1480, %v1480
      %v1545 = vpack.c.b16 %v1481, %v1481
      %v1546 = vpack.c.b16 %v1482, %v1482
      %v1547 = vpack.c.b16 %v1483, %v1483
      %v1548 = vpack.c.b16 %v1484, %v1484
      %v1549 = vpack.c.b16 %v1485, %v1485
      %v1550 = vpack.c.b16 %v1486, %v1486
      %v1551 = vpack.c.b16 %v1487, %v1487
      %v1552 = vpack.c.b16 %v1488, %v1488
      %v1553 = vpack.c.b16 %v1489, %v1489
      %v1554 = vpack.c.b16 %v1490, %v1490
      %v1555 = vpack.c.b16 %v1491, %v1491
      %v1556 = vpack.c.b16 %v1492, %v1492
      %v1557 = vpack.c.b16 %v1493, %v1493
      %v1558 = vpack.c.b16 %v1494, %v1494
      %v1559 = vpack.c.b16 %v1495, %v1495
      %v1560 = vpack.c.b16 %v1496, %v1496
      %v1561 = vpack.c.b16 %v1497, %v1497
      %v1562 = vpack.c.b16 %v1498, %v1498
      %v1563 = vpack.c.b16 %v1499, %v1499
      %v1564 = vpack.c.b16 %v1500, %v1500
      %v1565 = vpack.c.b16 %v1501, %v1501
      %v1566 = vpack.c.b16 %v1502, %v1502
      %v1567 = vpack.c.b16 %v1503, %v1503
      %v1568 = vpack.c.b16 %v1504, %v1504
      %v1569 = vpack.c.b16 %v1505, %v1505
      %v1570 = vpack.c.b16 %v1506, %v1506
      %v1571 = vpack.c.b16 %v1507, %v1507
      %v1572 = vpack.c.b16 %v1508, %v1508
      %v1573 = vpack.c.b16 %v1509, %v1509
      %1638 = vst [vmem:[#allocation8] sm:$0xf] %v1510
      %1639 = vst [vmem:[#allocation8 + $0x4] sm:$0xf] %v1511
      %1640 = vst [vmem:[#allocation8 + $0x8] sm:$0xf] %v1512
      %1641 = vst [vmem:[#allocation8 + $0xc] sm:$0xf] %v1513
      %1642 = vst [vmem:[#allocation8 + $0x10] sm:$0xf] %v1514
      %1643 = vst [vmem:[#allocation8 + $0x14] sm:$0xf] %v1515
      %1644 = vst [vmem:[#allocation8 + $0x18] sm:$0xf] %v1516
      %1645 = vst [vmem:[#allocation8 + $0x1c] sm:$0xf] %v1517
      %1646 = vst [vmem:[#allocation8 + $0x20] sm:$0xf] %v1518
      %1647 = vst [vmem:[#allocation8 + $0x24] sm:$0xf] %v1519
      %1648 = vst [vmem:[#allocation8 + $0x28] sm:$0xf] %v1520
      %1649 = vst [vmem:[#allocation8 + $0x2c] sm:$0xf] %v1521
      %1650 = vst [vmem:[#allocation8 + $0x30] sm:$0xf] %v1522
      %1651 = vst [vmem:[#allocation8 + $0x34] sm:$0xf] %v1523
      %1652 = vst [vmem:[#allocation8 + $0x38] sm:$0xf] %v1524
      %1653 = vst [vmem:[#allocation8 + $0x3c] sm:$0xf] %v1525
      %1654 = vst [vmem:[#allocation8 + $0x40] sm:$0xf] %v1526
      %1655 = vst [vmem:[#allocation8 + $0x44] sm:$0xf] %v1527
      %1656 = vst [vmem:[#allocation8 + $0x48] sm:$0xf] %v1528
      %1657 = vst [vmem:[#allocation8 + $0x4c] sm:$0xf] %v1529
      %1658 = vst [vmem:[#allocation8 + $0x50] sm:$0xf] %v1530
      %1659 = vst [vmem:[#allocation8 + $0x54] sm:$0xf] %v1531
      %1660 = vst [vmem:[#allocation8 + $0x58] sm:$0xf] %v1532
      %1661 = vst [vmem:[#allocation8 + $0x5c] sm:$0xf] %v1533
      %1662 = vst [vmem:[#allocation8 + $0x60] sm:$0xf] %v1534
      %1663 = vst [vmem:[#allocation8 + $0x64] sm:$0xf] %v1535
      %1664 = vst [vmem:[#allocation8 + $0x68] sm:$0xf] %v1536
      %1665 = vst [vmem:[#allocation8 + $0x6c] sm:$0xf] %v1537
      %1666 = vst [vmem:[#allocation8 + $0x70] sm:$0xf] %v1538
      %1667 = vst [vmem:[#allocation8 + $0x74] sm:$0xf] %v1539
      %1668 = vst [vmem:[#allocation8 + $0x78] sm:$0xf] %v1540
      %1669 = vst [vmem:[#allocation8 + $0x7c] sm:$0xf] %v1541
      %1670 = vst [vmem:[#allocation8 + $0x80] sm:$0xf] %v1542
      %1671 = vst [vmem:[#allocation8 + $0x84] sm:$0xf] %v1543
      %1672 = vst [vmem:[#allocation8 + $0x88] sm:$0xf] %v1544
      %1673 = vst [vmem:[#allocation8 + $0x8c] sm:$0xf] %v1545
      %1674 = vst [vmem:[#allocation8 + $0x90] sm:$0xf] %v1546
      %1675 = vst [vmem:[#allocation8 + $0x94] sm:$0xf] %v1547
      %1676 = vst [vmem:[#allocation8 + $0x98] sm:$0xf] %v1548
      %1677 = vst [vmem:[#allocation8 + $0x9c] sm:$0xf] %v1549
      %1678 = vst [vmem:[#allocation8 + $0xa0] sm:$0xf] %v1550
      %1679 = vst [vmem:[#allocation8 + $0xa4] sm:$0xf] %v1551
      %1680 = vst [vmem:[#allocation8 + $0xa8] sm:$0xf] %v1552
      %1681 = vst [vmem:[#allocation8 + $0xac] sm:$0xf] %v1553
      %1682 = vst [vmem:[#allocation8 + $0xb0] sm:$0xf] %v1554
      %1683 = vst [vmem:[#allocation8 + $0xb4] sm:$0xf] %v1555
      %1684 = vst [vmem:[#allocation8 + $0xb8] sm:$0xf] %v1556
      %1685 = vst [vmem:[#allocation8 + $0xbc] sm:$0xf] %v1557
      %1686 = vst [vmem:[#allocation8 + $0xc0] sm:$0xf] %v1558
      %1687 = vst [vmem:[#allocation8 + $0xc4] sm:$0xf] %v1559
      %1688 = vst [vmem:[#allocation8 + $0xc8] sm:$0xf] %v1560
      %1689 = vst [vmem:[#allocation8 + $0xcc] sm:$0xf] %v1561
      %1690 = vst [vmem:[#allocation8 + $0xd0] sm:$0xf] %v1562
      %1691 = vst [vmem:[#allocation8 + $0xd4] sm:$0xf] %v1563
      %1692 = vst [vmem:[#allocation8 + $0xd8] sm:$0xf] %v1564
      %1693 = vst [vmem:[#allocation8 + $0xdc] sm:$0xf] %v1565
      %1694 = vst [vmem:[#allocation8 + $0xe0] sm:$0xf] %v1566
      %1695 = vst [vmem:[#allocation8 + $0xe4] sm:$0xf] %v1567
      %1696 = vst [vmem:[#allocation8 + $0xe8] sm:$0xf] %v1568
      %1697 = vst [vmem:[#allocation8 + $0xec] sm:$0xf] %v1569
      %1698 = vst [vmem:[#allocation8 + $0xf0] sm:$0xf] %v1570
      %1699 = vst [vmem:[#allocation8 + $0xf4] sm:$0xf] %v1571
      %1700 = vst [vmem:[#allocation8 + $0xf8] sm:$0xf] %v1572
      %1701 = vst [vmem:[#allocation8 + $0xfc] sm:$0xf] %v1573
    $region25: #{tpu_custom_call.1} parent=1 // pred_fallthru
      _
    // Predicated region
    $region26: #{tpu_custom_call.1} parent=1 // pred_check
      _
    $region27: #{tpu_custom_call.1} parent=1 // pred_check_branch
      %1703 = sbr.rel (0) target = $region29
    $region28: #{tpu_custom_call.1} parent=1 // pred_region
      %s1705 = ssub.s32 4096, 4096
      %1706 = vsyncadd [#allocation5], %s1705
      %s1707 = sshll.u32 [#allocation8], 4
      %s1708 = int_to_ptr.vmem [resolvable:$true] %s1707
      %1713 = dma.vmem_to_hbm [thread:$0]  %s1708, 4096, %s2, [#allocation5], 64, 64, 4
    $region29: #{tpu_custom_call.1} parent=1 // pred_fallthru
      _
    // Predicated region
    $region30: #{tpu_custom_call.1} parent=1 // pred_check
      _
    $region31: #{tpu_custom_call.1} parent=1 // pred_check_branch
      %1715 = sbr.rel (0) target = $region33
    $region32: #{tpu_custom_call.1} parent=1 // pred_region
      %s1717 = ssub.s32 16, 16
      %1718 = vsyncadd [#allocation10], %s1717
      %s1720 = sshll.u32 [#allocation9], 4
      %s1721 = int_to_ptr.vmem [resolvable:$true] %s1720
      %1723 = dma.vmem_to_hbm [thread:$0]  %s1721, 16, %s3, [#allocation10]
    $region33: #{tpu_custom_call.1} parent=1 // pred_fallthru
      _
    // Predicated region
    $region34: #{tpu_custom_call.1} parent=1 // pred_check
      _
    $region35: #{tpu_custom_call.1} parent=1 // pred_check_branch
      %1725 = sbr.rel (0) target = $region37
    $region36: #{tpu_custom_call.1} parent=1 // pred_region
      %s1727 = ssub.s32 16, 16
      %1728 = vsyncadd [#allocation10], %s1727
      %s1730 = sshll.u32 [#allocation11], 4
      %s1731 = int_to_ptr.vmem [resolvable:$true] %s1730
      %1733 = dma.vmem_to_hbm [thread:$0]  %s1731, 16, %s4, [#allocation10]
    $region37: #{tpu_custom_call.1} parent=1 // pred_fallthru
      _
    // Predicated region
    $region38: #{tpu_custom_call.1} parent=1 // pred_check
      _
    $region39: #{tpu_custom_call.1} parent=1 // pred_check_branch
      %1735 = sbr.rel (0) target = $region41
    $region40: #{tpu_custom_call.1} parent=1 // pred_region
      %1736 = dma.done [#allocation5], 4096
    $region41: #{tpu_custom_call.1} parent=1 // pred_fallthru
      _
    // Predicated region
    $region42: #{tpu_custom_call.1} parent=1 // pred_check
      _
    $region43: #{tpu_custom_call.1} parent=1 // pred_check_branch
      %1738 = sbr.rel (0) target = $region45
    $region44: #{tpu_custom_call.1} parent=1 // pred_region
      %1739 = dma.done [#allocation10], 16
    $region45: #{tpu_custom_call.1} parent=1 // pred_fallthru
      _
    // Predicated region
    $region46: #{tpu_custom_call.1} parent=1 // pred_check
      _
    $region47: #{tpu_custom_call.1} parent=1 // pred_check_branch
      %1741 = sbr.rel (0) target = $region49
    $region48: #{tpu_custom_call.1} parent=1 // pred_region
      %1742 = dma.done [#allocation10], 16
    $region49: #{tpu_custom_call.1} parent=1 // pred_fallthru
      _
    %1743 = vsyncpa [#allocation4], 1
    %1744 = vsyncpa [#allocation7], 1
    %1745 = vsyncpa [#allocation5], 1
    %1746 = vsyncpa [#allocation10], 1

</llo_original>
